<compile_context>
chip_gen: v5e
topology: v5e:2x2
jax: 0.10.0
libtpu: 0.0.40
codegen_flags: <defaults>
</compile_context>

<pallas_src>
import functools

import jax
import jax.numpy as jnp
from jax.experimental import pallas as pl
from jax.experimental.pallas import tpu as pltpu

EPS = 1e-5


# ---------------------------------------------------------------------------
# Fused bottleneck kernel: one batch image per grid step.
# ---------------------------------------------------------------------------
def _bottleneck_kernel(x_ref, w1_ref, s1_ref, b1_ref,
                       w2_ref, s2_ref, b2_ref,
                       w3_ref, s3_ref, b3_ref,
                       *rest, wo, has_shortcut):
    if has_shortcut:
        ws_ref, ss_ref, bs_ref, o_ref = rest
    else:
        (o_ref,) = rest

    x = x_ref[0]                          # (M, Cin) in the compute dtype
    cdt = x.dtype
    m = x.shape[0]
    c0 = w1_ref.shape[1]

    # ---- c1: 1x1 conv + folded BN + ReLU ---------------------------------
    y1 = jnp.dot(x, w1_ref[...], preferred_element_type=jnp.float32)
    y1 = jnp.maximum(y1 * s1_ref[...] + b1_ref[...], 0.0)        # (M, C0) f32

    # ---- c2: 3x3 conv (padding=1) as ONE (M, 9*C0) x (9*C0, C1) GEMM -----
    # Row-major flattened image: pixel p = i*wo + j.  Pad wo+1 zero rows on
    # each side so every tap offset d = (ky-1)*wo + (kx-1) is a static row
    # slice of the padded buffer.  H-overflow lands in the zero padding
    # automatically; W-wraps are masked off with a per-row column mask.
    zpad = jnp.zeros((wo + 1, c0), jnp.float32)
    y1p = jnp.concatenate([zpad, y1, zpad], axis=0)              # (M+2wo+2, C0)
    col = jax.lax.broadcasted_iota(jnp.int32, (m, 1), 0) % wo    # j per row
    taps = []
    for ky in range(3):
        for kx in range(3):
            d = (ky - 1) * wo + (kx - 1)
            t = y1p[wo + 1 + d: wo + 1 + d + m, :]               # (M, C0)
            if kx == 0:
                t = jnp.where(col >= 1, t, 0.0)
            elif kx == 2:
                t = jnp.where(col <= wo - 2, t, 0.0)
            taps.append(t)
    patches = jnp.concatenate(taps, axis=-1)                     # (M, 9*C0)
    y2 = jnp.dot(patches.astype(cdt), w2_ref[...],
                 preferred_element_type=jnp.float32)
    y2 = jnp.maximum(y2 * s2_ref[...] + b2_ref[...], 0.0)        # (M, C1) f32

    # ---- c3: 1x1 conv + folded BN (ReLU only after the residual add) -----
    y3 = jnp.dot(y2.astype(cdt), w3_ref[...],
                 preferred_element_type=jnp.float32)
    y3 = y3 * s3_ref[...] + b3_ref[...]                          # (M, C2) f32

    # ---- residual branch + final ReLU -------------------------------------
    if has_shortcut:
        res = jnp.dot(x, ws_ref[...], preferred_element_type=jnp.float32)
        res = res * ss_ref[...] + bs_ref[...]
    else:
        res = x.astype(jnp.float32)       # identity shortcut (Cin == Cout)

    o_ref[0] = jnp.maximum(y3 + res, 0.0)


# ---------------------------------------------------------------------------
# Wrapper: layout glue + pallas_call.
# ---------------------------------------------------------------------------
def _fold_bn(p):
    """Fold conv bias + BatchNorm(eval) into per-channel scale/shift (f32)."""
    scale = p["gamma"] / jnp.sqrt(p["var"] + EPS)
    bias = p["beta"] + (p["b"] - p["mean"]) * scale
    return scale[None, :].astype(jnp.float32), bias[None, :].astype(jnp.float32)


def _rep_spec(arr):
    """Whole-array block with a constant index_map -> fetched into VMEM once."""
    return pl.BlockSpec(arr.shape, lambda i: (0,) * arr.ndim)


@functools.partial(jax.jit, static_argnames=("stride", "compute_dtype"))
def my_model_block(x_nchw, params, *, stride, compute_dtype=jnp.bfloat16):
    """Pallas implementation of myModelBlock.forward (input/output NCHW)."""
    n, cin, _, _ = x_nchw.shape
    x = jnp.transpose(x_nchw, (0, 2, 3, 1))                  # NCHW -> NHWC
    if stride == 2:
        # 1x1/stride-2 sampling, shared by the main path and the shortcut.
        x = x[:, ::2, ::2, :]
    ho, wo = x.shape[1], x.shape[2]
    m = ho * wo
    x_flat = x.reshape(n, m, cin).astype(compute_dtype)

    c1, c2, c3 = params["c1"], params["c2"], params["c3"]
    s1, b1 = _fold_bn(c1)
    s2, b2 = _fold_bn(c2)
    s3, b3 = _fold_bn(c3)
    w1 = c1["w"].astype(compute_dtype)                             # (Cin, C0)
    w2 = c2["w"].reshape(-1, c2["w"].shape[-1]).astype(compute_dtype)  # (9C0, C1)
    w3 = c3["w"].astype(compute_dtype)                             # (C1, C2)
    cout = c3["w"].shape[-1]
    has_shortcut = stride == 2

    inputs = [x_flat, w1, s1, b1, w2, s2, b2, w3, s3, b3]
    in_specs = [pl.BlockSpec((1, m, cin), lambda i: (i, 0, 0))]
    in_specs += [_rep_spec(a) for a in inputs[1:]]
    if has_shortcut:
        cs = params["cs"]
        ss, bs = _fold_bn(cs)
        ws = cs["w"].astype(compute_dtype)
        inputs += [ws, ss, bs]
        in_specs += [_rep_spec(ws), _rep_spec(ss), _rep_spec(bs)]

    out = pl.pallas_call(
        functools.partial(_bottleneck_kernel, wo=wo,
                          has_shortcut=has_shortcut),
        grid=(n,),
        in_specs=in_specs,
        out_specs=pl.BlockSpec((1, m, cout), lambda i: (i, 0, 0)),
        out_shape=jax.ShapeDtypeStruct((n, m, cout), jnp.float32),
        compiler_params=pltpu.CompilerParams(
            dimension_semantics=("parallel",)),
    )(*inputs)

    out = out.reshape(n, ho, wo, cout)
    return jnp.transpose(out, (0, 3, 1, 2))                   # NHWC -> NCHW


# ---------------------------------------------------------------------------
# Deterministic parameter construction (shapes from myModelBlock.__init__).
# ---------------------------------------------------------------------------
def _make_conv_bn(key, cin, cout, ksize):
    k1, k2, k3, k4, k5, k6 = jax.random.split(key, 6)
    if ksize == 1:
        w = jax.random.normal(k1, (cin, cout), jnp.float32) / jnp.sqrt(cin)
    else:
        w = jax.random.normal(k1, (ksize, ksize, cin, cout),
                              jnp.float32) / jnp.sqrt(ksize * ksize * cin)
    return dict(
        w=w,
        b=0.1 * jax.random.normal(k2, (cout,), jnp.float32),
        gamma=1.0 + 0.1 * jax.random.normal(k3, (cout,), jnp.float32),
        beta=0.1 * jax.random.normal(k4, (cout,), jnp.float32),
        mean=0.1 * jax.random.normal(k5, (cout,), jnp.float32),
        var=0.5 + jnp.abs(jax.random.normal(k6, (cout,), jnp.float32)),
    )


def init_params(key, input_size, channel_size, stride):
    k1, k2, k3, k4 = jax.random.split(key, 4)
    params = {
        "c1": _make_conv_bn(k1, input_size, channel_size[0], 1),
        "c2": _make_conv_bn(k2, channel_size[0], channel_size[1], 3),
        "c3": _make_conv_bn(k3, channel_size[1], channel_size[2], 1),
    }
    if stride == 2:
        params["cs"] = _make_conv_bn(k4, input_size, channel_size[2], 1)
    return params


# ---------------------------------------------------------------------------
# Pure-JAX reference (correctness checking only).
# ---------------------------------------------------------------------------
def _ref_conv_bn(x, p, stride, padding, ksize, relu):
    dn = ("NHWC", "HWIO", "NHWC")
    w = p["w"] if ksize == 3 else p["w"].reshape(1, 1, *p["w"].shape)
    y = jax.lax.conv_general_dilated(
        x, w, (stride, stride), padding, dimension_numbers=dn) + p["b"]
    y = (y - p["mean"]) / jnp.sqrt(p["var"] + EPS) * p["gamma"] + p["beta"]
    return jnp.maximum(y, 0.0) if relu else y


def reference_block(x_nchw, params, *, stride):
    x = jnp.transpose(x_nchw, (0, 2, 3, 1))
    y = _ref_conv_bn(x, params["c1"], stride, "VALID", 1, True)
    y = _ref_conv_bn(y, params["c2"], 1, ((1, 1), (1, 1)), 3, True)
    y = _ref_conv_bn(y, params["c3"], 1, "VALID", 1, False)
    origin = (_ref_conv_bn(x, params["cs"], 2, "VALID", 1, False)
              if stride == 2 else x)
    out = jnp.maximum(y + origin, 0.0)
    return jnp.transpose(out, (0, 3, 1, 2))


# ---------------------------------------------------------------------------
if __name__ == "__main__":
    key = jax.random.PRNGKey(0)
    kx, kp1, kp2 = jax.random.split(key, 3)

    # Small NCHW input consistent with the module: batch=2, C=4, 16x16 spatial.
    x = jax.random.normal(kx, (2, 4, 16, 16), jnp.float32)

    p2 = init_params(kp1, 4, (8, 8, 16), 2)   # first_stride=2 -> (2, 16, 8, 8)
    p1 = init_params(kp2, 4, (8, 8, 4), 1)    # first_stride=1 -> (2, 4, 16, 16)

    ref2 = reference_block(x, p2, stride=2)
    ref1 = reference_block(x, p1, stride=1)

    # Exact-math path (f32 everywhere) -- must match the reference tightly.
    out2_f32 = my_model_block(x, p2, stride=2, compute_dtype=jnp.float32)
    out1_f32 = my_model_block(x, p1, stride=1, compute_dtype=jnp.float32)

    # Default perf path (bf16 matmul operands, f32 accumulation + epilogue).
    out2_bf16 = my_model_block(x, p2, stride=2)
    out1_bf16 = my_model_block(x, p1, stride=1)

    jax.block_until_ready((out1_f32, out2_f32, out1_bf16, out2_bf16))

    assert out2_f32.shape == (2, 16, 8, 8), out2_f32.shape
    assert out1_f32.shape == (2, 4, 16, 16), out1_f32.shape
    assert jnp.allclose(out2_f32, ref2, rtol=1e-3, atol=1e-3), \
        float(jnp.max(jnp.abs(out2_f32 - ref2)))
    assert jnp.allclose(out1_f32, ref1, rtol=1e-3, atol=1e-3), \
        float(jnp.max(jnp.abs(out1_f32 - ref1)))
    assert jnp.allclose(out2_bf16, ref2, rtol=5e-2, atol=5e-2), \
        float(jnp.max(jnp.abs(out2_bf16 - ref2)))
    assert jnp.allclose(out1_bf16, ref1, rtol=5e-2, atol=5e-2), \
        float(jnp.max(jnp.abs(out1_bf16 - ref1)))

    print("KERNEL_OK")
</pallas_src>

<mosaic_0001>
module attributes {stable_mosaic.version = 11 : i64} {
  func.func @_bottleneck_kernel(%arg0: i32, %arg1: memref<1x64x4xf32, #tpu.memory_space<vmem>>, %arg2: memref<4x8xf32, #tpu.memory_space<vmem>>, %arg3: memref<1x8xf32, #tpu.memory_space<vmem>>, %arg4: memref<1x8xf32, #tpu.memory_space<vmem>>, %arg5: memref<72x8xf32, #tpu.memory_space<vmem>>, %arg6: memref<1x8xf32, #tpu.memory_space<vmem>>, %arg7: memref<1x8xf32, #tpu.memory_space<vmem>>, %arg8: memref<8x16xf32, #tpu.memory_space<vmem>>, %arg9: memref<1x16xf32, #tpu.memory_space<vmem>>, %arg10: memref<1x16xf32, #tpu.memory_space<vmem>>, %arg11: memref<4x16xf32, #tpu.memory_space<vmem>>, %arg12: memref<1x16xf32, #tpu.memory_space<vmem>>, %arg13: memref<1x16xf32, #tpu.memory_space<vmem>>, %arg14: memref<1x64x16xf32, #tpu.memory_space<vmem>>) attributes {dimension_semantics = [#tpu.dimension_semantics<parallel>], iteration_bounds = array<i64: 2>, scalar_prefetch = 0 : i64, scratch_operands = 0 : i64, tpu.core_type = #tpu.core_type<tc>, window_params = [{transform_indices = @transform_0, window_bounds = array<i64: 1, 64, 4>}, {pipeline_mode = #tpu.pipeline_mode<synchronous>, transform_indices = @transform_1, window_bounds = array<i64: 4, 8>}, {pipeline_mode = #tpu.pipeline_mode<synchronous>, transform_indices = @transform_2, window_bounds = array<i64: 1, 8>}, {pipeline_mode = #tpu.pipeline_mode<synchronous>, transform_indices = @transform_3, window_bounds = array<i64: 1, 8>}, {pipeline_mode = #tpu.pipeline_mode<synchronous>, transform_indices = @transform_4, window_bounds = array<i64: 72, 8>}, {pipeline_mode = #tpu.pipeline_mode<synchronous>, transform_indices = @transform_5, window_bounds = array<i64: 1, 8>}, {pipeline_mode = #tpu.pipeline_mode<synchronous>, transform_indices = @transform_6, window_bounds = array<i64: 1, 8>}, {pipeline_mode = #tpu.pipeline_mode<synchronous>, transform_indices = @transform_7, window_bounds = array<i64: 8, 16>}, {pipeline_mode = #tpu.pipeline_mode<synchronous>, transform_indices = @transform_8, window_bounds = array<i64: 1, 16>}, {pipeline_mode = #tpu.pipeline_mode<synchronous>, transform_indices = @transform_9, window_bounds = array<i64: 1, 16>}, {pipeline_mode = #tpu.pipeline_mode<synchronous>, transform_indices = @transform_10, window_bounds = array<i64: 4, 16>}, {pipeline_mode = #tpu.pipeline_mode<synchronous>, transform_indices = @transform_11, window_bounds = array<i64: 1, 16>}, {pipeline_mode = #tpu.pipeline_mode<synchronous>, transform_indices = @transform_12, window_bounds = array<i64: 1, 16>}, {transform_indices = @transform_13, window_bounds = array<i64: 1, 64, 16>}]} {
    %c0 = arith.constant 0 : index
    %c0_0 = arith.constant 0 : index
    %c0_1 = arith.constant 0 : index
    %0 = vector.load %arg1[%c0, %c0_0, %c0_1] : memref<1x64x4xf32, #tpu.memory_space<vmem>>, vector<1x64x4xf32>
    %1 = vector.shape_cast %0 : vector<1x64x4xf32> to vector<64x4xf32>
    %c0_2 = arith.constant 0 : index
    %c0_3 = arith.constant 0 : index
    %2 = vector.load %arg2[%c0_2, %c0_3] : memref<4x8xf32, #tpu.memory_space<vmem>>, vector<4x8xf32>
    %cst = arith.constant dense<0.000000e+00> : vector<64x8xf32>
    %3 = tpu.matmul %1, %2, %cst {dimension_numbers = #tpu.dot_dimension_numbers<[1], [0], [0], [1], [0, 0, 1, 1], [], []>} : vector<64x4xf32>, vector<4x8xf32>, vector<64x8xf32> -> vector<64x8xf32>
    %c0_4 = arith.constant 0 : index
    %c0_5 = arith.constant 0 : index
    %4 = vector.load %arg3[%c0_4, %c0_5] : memref<1x8xf32, #tpu.memory_space<vmem>>, vector<1x8xf32>
    %5 = vector.broadcast %4 : vector<1x8xf32> to vector<64x8xf32>
    %6 = arith.mulf %3, %5 : vector<64x8xf32>
    %c0_6 = arith.constant 0 : index
    %c0_7 = arith.constant 0 : index
    %7 = vector.load %arg4[%c0_6, %c0_7] : memref<1x8xf32, #tpu.memory_space<vmem>>, vector<1x8xf32>
    %8 = vector.broadcast %7 : vector<1x8xf32> to vector<64x8xf32>
    %9 = arith.addf %6, %8 : vector<64x8xf32>
    %cst_8 = arith.constant 0.000000e+00 : f32
    %10 = vector.broadcast %cst_8 : f32 to vector<64x8xf32>
    %11 = arith.maximumf %9, %10 : vector<64x8xf32>
    %cst_9 = arith.constant 0.000000e+00 : f32
    %12 = vector.broadcast %cst_9 : f32 to vector<9x8xf32>
    %13 = tpu.concatenate %12, %11, %12 in 0 : vector<9x8xf32>, vector<64x8xf32>, vector<9x8xf32> -> vector<82x8xf32>
    %14 = tpu.iota {dimensions = array<i32: 0>} : vector<64x1xi32>
    %c8_i32 = arith.constant 8 : i32
    %c0_i32 = arith.constant 0 : i32
    %15 = arith.cmpi eq, %c8_i32, %c0_i32 : i32
    %c1_i32 = arith.constant 1 : i32
    %16 = arith.select %15, %c1_i32, %c8_i32 : i32
    %17 = vector.broadcast %16 : i32 to vector<64x1xi32>
    %18 = arith.remsi %14, %17 : vector<64x1xi32>
    %c0_i32_10 = arith.constant 0 : i32
    %19 = vector.broadcast %c0_i32_10 : i32 to vector<64x1xi32>
    %20 = arith.cmpi ne, %18, %19 : vector<64x1xi32>
    %c0_i32_11 = arith.constant 0 : i32
    %21 = vector.broadcast %c0_i32_11 : i32 to vector<64x1xi32>
    %22 = arith.cmpi slt, %18, %21 : vector<64x1xi32>
    %c0_i32_12 = arith.constant 0 : i32
    %23 = arith.cmpi slt, %16, %c0_i32_12 : i32
    %24 = vector.broadcast %23 : i1 to vector<64x1xi1>
    %25 = vector.broadcast %24 : vector<64x1xi1> to vector<64x1xi1>
    %26 = arith.xori %22, %25 : vector<64x1xi1>
    %27 = arith.andi %26, %20 : vector<64x1xi1>
    %28 = vector.broadcast %16 : i32 to vector<64x1xi32>
    %29 = arith.addi %18, %28 : vector<64x1xi32>
    %30 = arith.select %27, %29, %18 : vector<64x1xi1>, vector<64x1xi32>
    %31 = vector.extract_strided_slice %13 {offsets = [0, 0], sizes = [64, 8], strides = [1, 1]} : vector<82x8xf32> to vector<64x8xf32>
    %c1_i32_13 = arith.constant 1 : i32
    %32 = vector.broadcast %c1_i32_13 : i32 to vector<64x1xi32>
    %33 = arith.cmpi sge, %30, %32 : vector<64x1xi32>
    %cst_14 = arith.constant 0.000000e+00 : f32
    %34 = vector.shape_cast %33 : vector<64x1xi1> to vector<64x1xi1>
    %35 = vector.broadcast %34 : vector<64x1xi1> to vector<64x8xi1>
    %36 = vector.broadcast %cst_14 : f32 to vector<64x8xf32>
    %37 = arith.select %35, %31, %36 : vector<64x8xi1>, vector<64x8xf32>
    %38 = vector.extract_strided_slice %13 {offsets = [1, 0], sizes = [64, 8], strides = [1, 1]} : vector<82x8xf32> to vector<64x8xf32>
    %39 = vector.extract_strided_slice %13 {offsets = [2, 0], sizes = [64, 8], strides = [1, 1]} : vector<82x8xf32> to vector<64x8xf32>
    %c6_i32 = arith.constant 6 : i32
    %40 = vector.broadcast %c6_i32 : i32 to vector<64x1xi32>
    %41 = arith.cmpi sle, %30, %40 : vector<64x1xi32>
    %cst_15 = arith.constant 0.000000e+00 : f32
    %42 = vector.shape_cast %41 : vector<64x1xi1> to vector<64x1xi1>
    %43 = vector.broadcast %42 : vector<64x1xi1> to vector<64x8xi1>
    %44 = vector.broadcast %cst_15 : f32 to vector<64x8xf32>
    %45 = arith.select %43, %39, %44 : vector<64x8xi1>, vector<64x8xf32>
    %46 = vector.extract_strided_slice %13 {offsets = [8, 0], sizes = [64, 8], strides = [1, 1]} : vector<82x8xf32> to vector<64x8xf32>
    %c1_i32_16 = arith.constant 1 : i32
    %47 = vector.broadcast %c1_i32_16 : i32 to vector<64x1xi32>
    %48 = arith.cmpi sge, %30, %47 : vector<64x1xi32>
    %cst_17 = arith.constant 0.000000e+00 : f32
    %49 = vector.shape_cast %48 : vector<64x1xi1> to vector<64x1xi1>
    %50 = vector.broadcast %49 : vector<64x1xi1> to vector<64x8xi1>
    %51 = vector.broadcast %cst_17 : f32 to vector<64x8xf32>
    %52 = arith.select %50, %46, %51 : vector<64x8xi1>, vector<64x8xf32>
    %53 = vector.extract_strided_slice %13 {offsets = [9, 0], sizes = [64, 8], strides = [1, 1]} : vector<82x8xf32> to vector<64x8xf32>
    %54 = vector.extract_strided_slice %13 {offsets = [10, 0], sizes = [64, 8], strides = [1, 1]} : vector<82x8xf32> to vector<64x8xf32>
    %c6_i32_18 = arith.constant 6 : i32
    %55 = vector.broadcast %c6_i32_18 : i32 to vector<64x1xi32>
    %56 = arith.cmpi sle, %30, %55 : vector<64x1xi32>
    %cst_19 = arith.constant 0.000000e+00 : f32
    %57 = vector.shape_cast %56 : vector<64x1xi1> to vector<64x1xi1>
    %58 = vector.broadcast %57 : vector<64x1xi1> to vector<64x8xi1>
    %59 = vector.broadcast %cst_19 : f32 to vector<64x8xf32>
    %60 = arith.select %58, %54, %59 : vector<64x8xi1>, vector<64x8xf32>
    %61 = vector.extract_strided_slice %13 {offsets = [16, 0], sizes = [64, 8], strides = [1, 1]} : vector<82x8xf32> to vector<64x8xf32>
    %c1_i32_20 = arith.constant 1 : i32
    %62 = vector.broadcast %c1_i32_20 : i32 to vector<64x1xi32>
    %63 = arith.cmpi sge, %30, %62 : vector<64x1xi32>
    %cst_21 = arith.constant 0.000000e+00 : f32
    %64 = vector.shape_cast %63 : vector<64x1xi1> to vector<64x1xi1>
    %65 = vector.broadcast %64 : vector<64x1xi1> to vector<64x8xi1>
    %66 = vector.broadcast %cst_21 : f32 to vector<64x8xf32>
    %67 = arith.select %65, %61, %66 : vector<64x8xi1>, vector<64x8xf32>
    %68 = vector.extract_strided_slice %13 {offsets = [17, 0], sizes = [64, 8], strides = [1, 1]} : vector<82x8xf32> to vector<64x8xf32>
    %69 = vector.extract_strided_slice %13 {offsets = [18, 0], sizes = [64, 8], strides = [1, 1]} : vector<82x8xf32> to vector<64x8xf32>
    %c6_i32_22 = arith.constant 6 : i32
    %70 = vector.broadcast %c6_i32_22 : i32 to vector<64x1xi32>
    %71 = arith.cmpi sle, %30, %70 : vector<64x1xi32>
    %cst_23 = arith.constant 0.000000e+00 : f32
    %72 = vector.shape_cast %71 : vector<64x1xi1> to vector<64x1xi1>
    %73 = vector.broadcast %72 : vector<64x1xi1> to vector<64x8xi1>
    %74 = vector.broadcast %cst_23 : f32 to vector<64x8xf32>
    %75 = arith.select %73, %69, %74 : vector<64x8xi1>, vector<64x8xf32>
    %76 = tpu.concatenate %37, %38, %45, %52, %53, %60, %67, %68, %75 in 1 : vector<64x8xf32>, vector<64x8xf32>, vector<64x8xf32>, vector<64x8xf32>, vector<64x8xf32>, vector<64x8xf32>, vector<64x8xf32>, vector<64x8xf32>, vector<64x8xf32> -> vector<64x72xf32>
    %c0_24 = arith.constant 0 : index
    %c0_25 = arith.constant 0 : index
    %77 = vector.load %arg5[%c0_24, %c0_25] : memref<72x8xf32, #tpu.memory_space<vmem>>, vector<72x8xf32>
    %cst_26 = arith.constant dense<0.000000e+00> : vector<64x8xf32>
    %78 = tpu.matmul %76, %77, %cst_26 {dimension_numbers = #tpu.dot_dimension_numbers<[1], [0], [0], [1], [0, 0, 1, 1], [], []>} : vector<64x72xf32>, vector<72x8xf32>, vector<64x8xf32> -> vector<64x8xf32>
    %c0_27 = arith.constant 0 : index
    %c0_28 = arith.constant 0 : index
    %79 = vector.load %arg6[%c0_27, %c0_28] : memref<1x8xf32, #tpu.memory_space<vmem>>, vector<1x8xf32>
    %80 = vector.broadcast %79 : vector<1x8xf32> to vector<64x8xf32>
    %81 = arith.mulf %78, %80 : vector<64x8xf32>
    %c0_29 = arith.constant 0 : index
    %c0_30 = arith.constant 0 : index
    %82 = vector.load %arg7[%c0_29, %c0_30] : memref<1x8xf32, #tpu.memory_space<vmem>>, vector<1x8xf32>
    %83 = vector.broadcast %82 : vector<1x8xf32> to vector<64x8xf32>
    %84 = arith.addf %81, %83 : vector<64x8xf32>
    %cst_31 = arith.constant 0.000000e+00 : f32
    %85 = vector.broadcast %cst_31 : f32 to vector<64x8xf32>
    %86 = arith.maximumf %84, %85 : vector<64x8xf32>
    %c0_32 = arith.constant 0 : index
    %c0_33 = arith.constant 0 : index
    %87 = vector.load %arg8[%c0_32, %c0_33] : memref<8x16xf32, #tpu.memory_space<vmem>>, vector<8x16xf32>
    %cst_34 = arith.constant dense<0.000000e+00> : vector<64x16xf32>
    %88 = tpu.matmul %86, %87, %cst_34 {dimension_numbers = #tpu.dot_dimension_numbers<[1], [0], [0], [1], [0, 0, 1, 1], [], []>} : vector<64x8xf32>, vector<8x16xf32>, vector<64x16xf32> -> vector<64x16xf32>
    %c0_35 = arith.constant 0 : index
    %c0_36 = arith.constant 0 : index
    %89 = vector.load %arg9[%c0_35, %c0_36] : memref<1x16xf32, #tpu.memory_space<vmem>>, vector<1x16xf32>
    %90 = vector.broadcast %89 : vector<1x16xf32> to vector<64x16xf32>
    %91 = arith.mulf %88, %90 : vector<64x16xf32>
    %c0_37 = arith.constant 0 : index
    %c0_38 = arith.constant 0 : index
    %92 = vector.load %arg10[%c0_37, %c0_38] : memref<1x16xf32, #tpu.memory_space<vmem>>, vector<1x16xf32>
    %93 = vector.broadcast %92 : vector<1x16xf32> to vector<64x16xf32>
    %94 = arith.addf %91, %93 : vector<64x16xf32>
    %c0_39 = arith.constant 0 : index
    %c0_40 = arith.constant 0 : index
    %95 = vector.load %arg11[%c0_39, %c0_40] : memref<4x16xf32, #tpu.memory_space<vmem>>, vector<4x16xf32>
    %cst_41 = arith.constant dense<0.000000e+00> : vector<64x16xf32>
    %96 = tpu.matmul %1, %95, %cst_41 {dimension_numbers = #tpu.dot_dimension_numbers<[1], [0], [0], [1], [0, 0, 1, 1], [], []>} : vector<64x4xf32>, vector<4x16xf32>, vector<64x16xf32> -> vector<64x16xf32>
    %c0_42 = arith.constant 0 : index
    %c0_43 = arith.constant 0 : index
    %97 = vector.load %arg12[%c0_42, %c0_43] : memref<1x16xf32, #tpu.memory_space<vmem>>, vector<1x16xf32>
    %98 = vector.broadcast %97 : vector<1x16xf32> to vector<64x16xf32>
    %99 = arith.mulf %96, %98 : vector<64x16xf32>
    %c0_44 = arith.constant 0 : index
    %c0_45 = arith.constant 0 : index
    %100 = vector.load %arg13[%c0_44, %c0_45] : memref<1x16xf32, #tpu.memory_space<vmem>>, vector<1x16xf32>
    %101 = vector.broadcast %100 : vector<1x16xf32> to vector<64x16xf32>
    %102 = arith.addf %99, %101 : vector<64x16xf32>
    %103 = arith.addf %94, %102 : vector<64x16xf32>
    %cst_46 = arith.constant 0.000000e+00 : f32
    %104 = vector.broadcast %cst_46 : f32 to vector<64x16xf32>
    %105 = arith.maximumf %103, %104 : vector<64x16xf32>
    %c0_47 = arith.constant 0 : index
    %c0_48 = arith.constant 0 : index
    %c0_49 = arith.constant 0 : index
    %106 = vector.load %arg14[%c0_47, %c0_48, %c0_49] : memref<1x64x16xf32, #tpu.memory_space<vmem>>, vector<1x64x16xf32>
    %107 = vector.shape_cast %106 : vector<1x64x16xf32> to vector<64x16xf32>
    %108 = vector.shape_cast %105 : vector<64x16xf32> to vector<1x64x16xf32>
    tpu.vector_store %arg14[%c0_47, %c0_48, %c0_49], %108 {strides = array<i32>} : memref<1x64x16xf32, #tpu.memory_space<vmem>>, vector<1x64x16xf32>,
    return
  }
  func.func @transform_0(%arg0: i32) -> (i32, i32, i32) {
    %c0_i32 = arith.constant 0 : i32
    %c0_i32_0 = arith.constant 0 : i32
    %c0_i32_1 = arith.constant 0 : i32
    return %arg0, %c0_i32, %c0_i32_0 : i32, i32, i32
  }
  func.func @transform_1(%arg0: i32) -> (i32, i32) {
    %c0_i32 = arith.constant 0 : i32
    %c0_i32_0 = arith.constant 0 : i32
    %c0_i32_1 = arith.constant 0 : i32
    return %c0_i32, %c0_i32_0 : i32, i32
  }
  func.func @transform_2(%arg0: i32) -> (i32, i32) {
    %c0_i32 = arith.constant 0 : i32
    %c0_i32_0 = arith.constant 0 : i32
    %c0_i32_1 = arith.constant 0 : i32
    return %c0_i32, %c0_i32_0 : i32, i32
  }
  func.func @transform_3(%arg0: i32) -> (i32, i32) {
    %c0_i32 = arith.constant 0 : i32
    %c0_i32_0 = arith.constant 0 : i32
    %c0_i32_1 = arith.constant 0 : i32
    return %c0_i32, %c0_i32_0 : i32, i32
  }
  func.func @transform_4(%arg0: i32) -> (i32, i32) {
    %c0_i32 = arith.constant 0 : i32
    %c0_i32_0 = arith.constant 0 : i32
    %c0_i32_1 = arith.constant 0 : i32
    return %c0_i32, %c0_i32_0 : i32, i32
  }
  func.func @transform_5(%arg0: i32) -> (i32, i32) {
    %c0_i32 = arith.constant 0 : i32
    %c0_i32_0 = arith.constant 0 : i32
    %c0_i32_1 = arith.constant 0 : i32
    return %c0_i32, %c0_i32_0 : i32, i32
  }
  func.func @transform_6(%arg0: i32) -> (i32, i32) {
    %c0_i32 = arith.constant 0 : i32
    %c0_i32_0 = arith.constant 0 : i32
    %c0_i32_1 = arith.constant 0 : i32
    return %c0_i32, %c0_i32_0 : i32, i32
  }
  func.func @transform_7(%arg0: i32) -> (i32, i32) {
    %c0_i32 = arith.constant 0 : i32
    %c0_i32_0 = arith.constant 0 : i32
    %c0_i32_1 = arith.constant 0 : i32
    return %c0_i32, %c0_i32_0 : i32, i32
  }
  func.func @transform_8(%arg0: i32) -> (i32, i32) {
    %c0_i32 = arith.constant 0 : i32
    %c0_i32_0 = arith.constant 0 : i32
    %c0_i32_1 = arith.constant 0 : i32
    return %c0_i32, %c0_i32_0 : i32, i32
  }
  func.func @transform_9(%arg0: i32) -> (i32, i32) {
    %c0_i32 = arith.constant 0 : i32
    %c0_i32_0 = arith.constant 0 : i32
    %c0_i32_1 = arith.constant 0 : i32
    return %c0_i32, %c0_i32_0 : i32, i32
  }
  func.func @transform_10(%arg0: i32) -> (i32, i32) {
    %c0_i32 = arith.constant 0 : i32
    %c0_i32_0 = arith.constant 0 : i32
    %c0_i32_1 = arith.constant 0 : i32
    return %c0_i32, %c0_i32_0 : i32, i32
  }
  func.func @transform_11(%arg0: i32) -> (i32, i32) {
    %c0_i32 = arith.constant 0 : i32
    %c0_i32_0 = arith.constant 0 : i32
    %c0_i32_1 = arith.constant 0 : i32
    return %c0_i32, %c0_i32_0 : i32, i32
  }
  func.func @transform_12(%arg0: i32) -> (i32, i32) {
    %c0_i32 = arith.constant 0 : i32
    %c0_i32_0 = arith.constant 0 : i32
    %c0_i32_1 = arith.constant 0 : i32
    return %c0_i32, %c0_i32_0 : i32, i32
  }
  func.func @transform_13(%arg0: i32) -> (i32, i32, i32) {
    %c0_i32 = arith.constant 0 : i32
    %c0_i32_0 = arith.constant 0 : i32
    %c0_i32_1 = arith.constant 0 : i32
    return %arg0, %c0_i32, %c0_i32_0 : i32, i32, i32
  }
}

</mosaic_0001>

<llo_original>
// kernel: my_model_block.1
$region0: #{my_model_block.1}
  #allocation0 [shape = 'u32[]', space=smem, size = 0x4, offset = 0x4, fixed_abs, tag = 'smem constant byte address 0x4 - core index']
  #allocation1 [shape = 'u32[72,128]{1,0:T(1,128)}', space=vmem, size = 0x9000, scoped, tag = 'internal scratch']
  %s0 = inlined_call_operand.vmem [shape: f32[2,64,4], index: 0, kind: input, shape index: {}]
  %s1 = inlined_call_operand.vmem [shape: f32[4,8], index: 1, kind: input, shape index: {}]
  %s2 = inlined_call_operand.vmem [shape: f32[1,8], index: 2, kind: input, shape index: {}]
  %s3 = inlined_call_operand.vmem [shape: f32[1,8], index: 3, kind: input, shape index: {}]
  %s4 = inlined_call_operand.vmem [shape: f32[72,8], index: 4, kind: input, shape index: {}]
  %s5 = inlined_call_operand.vmem [shape: f32[1,8], index: 5, kind: input, shape index: {}]
  %s6 = inlined_call_operand.vmem [shape: f32[1,8], index: 6, kind: input, shape index: {}]
  %s7 = inlined_call_operand.vmem [shape: f32[8,16], index: 7, kind: input, shape index: {}]
  %s8 = inlined_call_operand.vmem [shape: f32[1,16], index: 8, kind: input, shape index: {}]
  %s9 = inlined_call_operand.vmem [shape: f32[1,16], index: 9, kind: input, shape index: {}]
  %s10 = inlined_call_operand.vmem [shape: f32[4,16], index: 10, kind: input, shape index: {}]
  %s11 = inlined_call_operand.vmem [shape: f32[1,16], index: 11, kind: input, shape index: {}]
  %s12 = inlined_call_operand.vmem [shape: f32[1,16], index: 12, kind: input, shape index: {}]
  %s13 = inlined_call_operand.hbm [shape: f32[2,64,16], index: 13, kind: output, shape index: {}]
  %s14 = sld [smem:[#allocation0]]
  $region85: #{my_model_block.1} parent=0
    _
  %s16 = ssub.s32 1, %s14
  %s17 = scalar_select 0, %s16, %s14
  $region1: #{my_model_block.1} parent=0
    #allocation2 [shape = 'u8[65536]{0}', space=vmem, size = 0x10000, scoped, tag = 'output window, operand 0']
    #allocation3 [shape = 's32[2]{0}', space=sflag, size = 0x8, scoped, tag = 'scoped memory for my_model_block.1']
    %18 = vsyncpa [#allocation3], 0
    %s19 = scalar_lea.sflag [#allocation3], 1
    %20 = vsyncpa %s19, 0
    loop: start=0, step=1, limit=4
    $region2: #{my_model_block.1} parent=1 // loop_pre_header
      _
    $region3: #{my_model_block.1} parent=1 // loop_header
      %s22 = sphi 0, %s26
      %p23 = scmp.ge.s32.totalorder %s22, 4
      %s32 = sphi 0, %s34
      %s35 = sphi 0, %s32
      %s36 = sphi 0, %s35
      %s52 = sphi 0, %s36
      %s56 = sphi 0, %s56
      %s58 = sphi 0, %s56
      %s59 = sphi 0, %s58
      %s73 = sphi 0, %s59
      %s77 = sphi 0, %s77
      %s79 = sphi 0, %s77
      %s80 = sphi 0, %s79
      %s94 = sphi 0, %s80
      %s98 = sphi 0, %s98
      %s100 = sphi 0, %s98
      %s101 = sphi 0, %s100
      %s115 = sphi 0, %s101
      %s119 = sphi 0, %s119
      %s121 = sphi 0, %s119
      %s122 = sphi 0, %s121
      %s136 = sphi 0, %s122
      %s140 = sphi 0, %s140
      %s142 = sphi 0, %s140
      %s143 = sphi 0, %s142
      %s157 = sphi 0, %s143
      %s161 = sphi 0, %s161
      %s163 = sphi 0, %s161
      %s164 = sphi 0, %s163
      %s178 = sphi 0, %s164
      %s182 = sphi 0, %s182
      %s184 = sphi 0, %s182
      %s185 = sphi 0, %s184
      %s199 = sphi 0, %s185
      %s203 = sphi 0, %s203
      %s205 = sphi 0, %s203
      %s206 = sphi 0, %s205
      %s220 = sphi 0, %s206
      %s224 = sphi 0, %s224
      %s226 = sphi 0, %s224
      %s227 = sphi 0, %s226
      %s241 = sphi 0, %s227
      %s245 = sphi 0, %s245
      %s247 = sphi 0, %s245
      %s248 = sphi 0, %s247
      %s262 = sphi 0, %s248
      %s266 = sphi 0, %s266
      %s268 = sphi 0, %s266
      %s269 = sphi 0, %s268
      %s283 = sphi 0, %s269
      %s287 = sphi 0, %s287
      %s289 = sphi 0, %s287
      %s290 = sphi 0, %s289
      %s304 = sphi 0, %s290
      %s310 = sphi 0, %s312
      %s313 = sphi 0, %s310
      %s314 = sphi 0, %s313
      %s330 = sphi 0, %s314
    $region4: #{my_model_block.1} parent=1 // loop_header_branch
      %25 = sbr.rel (%p23) target = $region8
    $region5: #{my_model_block.1} parent=1 // loop_body
      %s27 = ssub.s32 %s22, 1
      %s28 = ssub.s32 %s22, 2
      %s29 = sadd.s32 %s22, 1
      %s30 = ssub.s32 %s22, %s29
      %p31 = scmp.eq.s32.totalorder %s30, 0
      %s33 = sadd.s32 %s32, 1
      %s34 = scalar_select %p31, %s32, %s33
      %p37 = pneg %p31
      %p38 = scmp.eq.s32.totalorder %s22, 1
      %p39 = por %p37, %p38
      %p40 = scmp.ne.s32.totalorder %s32, %s35
      %p41 = scmp.eq.s32.totalorder %s22, 0
      %p42 = por %p40, %p41
      %p43 = scmp.ne.s32.totalorder %s32, %s35
      %p44 = scmp.eq.s32.totalorder %s27, 1
      %p45 = por %p43, %p44
      %p46 = scmp.ne.s32.totalorder %s35, %s36
      %p47 = scmp.eq.s32.totalorder %s27, 0
      %p48 = por %p46, %p47
      %p49 = scmp.ne.s32.totalorder %s35, %s36
      %p50 = scmp.eq.s32.totalorder %s28, 1
      %p51 = por %p49, %p50
      %p53 = scmp.ne.s32.totalorder %s36, %s52
      %p54 = scmp.eq.s32.totalorder %s28, 0
      %p55 = por %p53, %p54
      %s57 = sadd.s32 %s56, 1
      %p60 = scmp.eq.s32.totalorder %s22, 1
      %p61 = scmp.ne.s32.totalorder %s56, %s58
      %p62 = scmp.eq.s32.totalorder %s22, 0
      %p63 = por %p61, %p62
      %p64 = scmp.ne.s32.totalorder %s56, %s58
      %p65 = scmp.eq.s32.totalorder %s27, 1
      %p66 = por %p64, %p65
      %p67 = scmp.ne.s32.totalorder %s58, %s59
      %p68 = scmp.eq.s32.totalorder %s27, 0
      %p69 = por %p67, %p68
      %p70 = scmp.ne.s32.totalorder %s58, %s59
      %p71 = scmp.eq.s32.totalorder %s28, 1
      %p72 = por %p70, %p71
      %p74 = scmp.ne.s32.totalorder %s59, %s73
      %p75 = scmp.eq.s32.totalorder %s28, 0
      %p76 = por %p74, %p75
      %s78 = sadd.s32 %s77, 1
      %p81 = scmp.eq.s32.totalorder %s22, 1
      %p82 = scmp.ne.s32.totalorder %s77, %s79
      %p83 = scmp.eq.s32.totalorder %s22, 0
      %p84 = por %p82, %p83
      %p85 = scmp.ne.s32.totalorder %s77, %s79
      %p86 = scmp.eq.s32.totalorder %s27, 1
      %p87 = por %p85, %p86
      %p88 = scmp.ne.s32.totalorder %s79, %s80
      %p89 = scmp.eq.s32.totalorder %s27, 0
      %p90 = por %p88, %p89
      %p91 = scmp.ne.s32.totalorder %s79, %s80
      %p92 = scmp.eq.s32.totalorder %s28, 1
      %p93 = por %p91, %p92
      %p95 = scmp.ne.s32.totalorder %s80, %s94
      %p96 = scmp.eq.s32.totalorder %s28, 0
      %p97 = por %p95, %p96
      %s99 = sadd.s32 %s98, 1
      %p102 = scmp.eq.s32.totalorder %s22, 1
      %p103 = scmp.ne.s32.totalorder %s98, %s100
      %p104 = scmp.eq.s32.totalorder %s22, 0
      %p105 = por %p103, %p104
      %p106 = scmp.ne.s32.totalorder %s98, %s100
      %p107 = scmp.eq.s32.totalorder %s27, 1
      %p108 = por %p106, %p107
      %p109 = scmp.ne.s32.totalorder %s100, %s101
      %p110 = scmp.eq.s32.totalorder %s27, 0
      %p111 = por %p109, %p110
      %p112 = scmp.ne.s32.totalorder %s100, %s101
      %p113 = scmp.eq.s32.totalorder %s28, 1
      %p114 = por %p112, %p113
      %p116 = scmp.ne.s32.totalorder %s101, %s115
      %p117 = scmp.eq.s32.totalorder %s28, 0
      %p118 = por %p116, %p117
      %s120 = sadd.s32 %s119, 1
      %p123 = scmp.eq.s32.totalorder %s22, 1
      %p124 = scmp.ne.s32.totalorder %s119, %s121
      %p125 = scmp.eq.s32.totalorder %s22, 0
      %p126 = por %p124, %p125
      %p127 = scmp.ne.s32.totalorder %s119, %s121
      %p128 = scmp.eq.s32.totalorder %s27, 1
      %p129 = por %p127, %p128
      %p130 = scmp.ne.s32.totalorder %s121, %s122
      %p131 = scmp.eq.s32.totalorder %s27, 0
      %p132 = por %p130, %p131
      %p133 = scmp.ne.s32.totalorder %s121, %s122
      %p134 = scmp.eq.s32.totalorder %s28, 1
      %p135 = por %p133, %p134
      %p137 = scmp.ne.s32.totalorder %s122, %s136
      %p138 = scmp.eq.s32.totalorder %s28, 0
      %p139 = por %p137, %p138
      %s141 = sadd.s32 %s140, 1
      %p144 = scmp.eq.s32.totalorder %s22, 1
      %p145 = scmp.ne.s32.totalorder %s140, %s142
      %p146 = scmp.eq.s32.totalorder %s22, 0
      %p147 = por %p145, %p146
      %p148 = scmp.ne.s32.totalorder %s140, %s142
      %p149 = scmp.eq.s32.totalorder %s27, 1
      %p150 = por %p148, %p149
      %p151 = scmp.ne.s32.totalorder %s142, %s143
      %p152 = scmp.eq.s32.totalorder %s27, 0
      %p153 = por %p151, %p152
      %p154 = scmp.ne.s32.totalorder %s142, %s143
      %p155 = scmp.eq.s32.totalorder %s28, 1
      %p156 = por %p154, %p155
      %p158 = scmp.ne.s32.totalorder %s143, %s157
      %p159 = scmp.eq.s32.totalorder %s28, 0
      %p160 = por %p158, %p159
      %s162 = sadd.s32 %s161, 1
      %p165 = scmp.eq.s32.totalorder %s22, 1
      %p166 = scmp.ne.s32.totalorder %s161, %s163
      %p167 = scmp.eq.s32.totalorder %s22, 0
      %p168 = por %p166, %p167
      %p169 = scmp.ne.s32.totalorder %s161, %s163
      %p170 = scmp.eq.s32.totalorder %s27, 1
      %p171 = por %p169, %p170
      %p172 = scmp.ne.s32.totalorder %s163, %s164
      %p173 = scmp.eq.s32.totalorder %s27, 0
      %p174 = por %p172, %p173
      %p175 = scmp.ne.s32.totalorder %s163, %s164
      %p176 = scmp.eq.s32.totalorder %s28, 1
      %p177 = por %p175, %p176
      %p179 = scmp.ne.s32.totalorder %s164, %s178
      %p180 = scmp.eq.s32.totalorder %s28, 0
      %p181 = por %p179, %p180
      %s183 = sadd.s32 %s182, 1
      %p186 = scmp.eq.s32.totalorder %s22, 1
      %p187 = scmp.ne.s32.totalorder %s182, %s184
      %p188 = scmp.eq.s32.totalorder %s22, 0
      %p189 = por %p187, %p188
      %p190 = scmp.ne.s32.totalorder %s182, %s184
      %p191 = scmp.eq.s32.totalorder %s27, 1
      %p192 = por %p190, %p191
      %p193 = scmp.ne.s32.totalorder %s184, %s185
      %p194 = scmp.eq.s32.totalorder %s27, 0
      %p195 = por %p193, %p194
      %p196 = scmp.ne.s32.totalorder %s184, %s185
      %p197 = scmp.eq.s32.totalorder %s28, 1
      %p198 = por %p196, %p197
      %p200 = scmp.ne.s32.totalorder %s185, %s199
      %p201 = scmp.eq.s32.totalorder %s28, 0
      %p202 = por %p200, %p201
      %s204 = sadd.s32 %s203, 1
      %p207 = scmp.eq.s32.totalorder %s22, 1
      %p208 = scmp.ne.s32.totalorder %s203, %s205
      %p209 = scmp.eq.s32.totalorder %s22, 0
      %p210 = por %p208, %p209
      %p211 = scmp.ne.s32.totalorder %s203, %s205
      %p212 = scmp.eq.s32.totalorder %s27, 1
      %p213 = por %p211, %p212
      %p214 = scmp.ne.s32.totalorder %s205, %s206
      %p215 = scmp.eq.s32.totalorder %s27, 0
      %p216 = por %p214, %p215
      %p217 = scmp.ne.s32.totalorder %s205, %s206
      %p218 = scmp.eq.s32.totalorder %s28, 1
      %p219 = por %p217, %p218
      %p221 = scmp.ne.s32.totalorder %s206, %s220
      %p222 = scmp.eq.s32.totalorder %s28, 0
      %p223 = por %p221, %p222
      %s225 = sadd.s32 %s224, 1
      %p228 = scmp.eq.s32.totalorder %s22, 1
      %p229 = scmp.ne.s32.totalorder %s224, %s226
      %p230 = scmp.eq.s32.totalorder %s22, 0
      %p231 = por %p229, %p230
      %p232 = scmp.ne.s32.totalorder %s224, %s226
      %p233 = scmp.eq.s32.totalorder %s27, 1
      %p234 = por %p232, %p233
      %p235 = scmp.ne.s32.totalorder %s226, %s227
      %p236 = scmp.eq.s32.totalorder %s27, 0
      %p237 = por %p235, %p236
      %p238 = scmp.ne.s32.totalorder %s226, %s227
      %p239 = scmp.eq.s32.totalorder %s28, 1
      %p240 = por %p238, %p239
      %p242 = scmp.ne.s32.totalorder %s227, %s241
      %p243 = scmp.eq.s32.totalorder %s28, 0
      %p244 = por %p242, %p243
      %s246 = sadd.s32 %s245, 1
      %p249 = scmp.eq.s32.totalorder %s22, 1
      %p250 = scmp.ne.s32.totalorder %s245, %s247
      %p251 = scmp.eq.s32.totalorder %s22, 0
      %p252 = por %p250, %p251
      %p253 = scmp.ne.s32.totalorder %s245, %s247
      %p254 = scmp.eq.s32.totalorder %s27, 1
      %p255 = por %p253, %p254
      %p256 = scmp.ne.s32.totalorder %s247, %s248
      %p257 = scmp.eq.s32.totalorder %s27, 0
      %p258 = por %p256, %p257
      %p259 = scmp.ne.s32.totalorder %s247, %s248
      %p260 = scmp.eq.s32.totalorder %s28, 1
      %p261 = por %p259, %p260
      %p263 = scmp.ne.s32.totalorder %s248, %s262
      %p264 = scmp.eq.s32.totalorder %s28, 0
      %p265 = por %p263, %p264
      %s267 = sadd.s32 %s266, 1
      %p270 = scmp.eq.s32.totalorder %s22, 1
      %p271 = scmp.ne.s32.totalorder %s266, %s268
      %p272 = scmp.eq.s32.totalorder %s22, 0
      %p273 = por %p271, %p272
      %p274 = scmp.ne.s32.totalorder %s266, %s268
      %p275 = scmp.eq.s32.totalorder %s27, 1
      %p276 = por %p274, %p275
      %p277 = scmp.ne.s32.totalorder %s268, %s269
      %p278 = scmp.eq.s32.totalorder %s27, 0
      %p279 = por %p277, %p278
      %p280 = scmp.ne.s32.totalorder %s268, %s269
      %p281 = scmp.eq.s32.totalorder %s28, 1
      %p282 = por %p280, %p281
      %p284 = scmp.ne.s32.totalorder %s269, %s283
      %p285 = scmp.eq.s32.totalorder %s28, 0
      %p286 = por %p284, %p285
      %s288 = sadd.s32 %s287, 1
      %p291 = scmp.eq.s32.totalorder %s22, 1
      %p292 = scmp.ne.s32.totalorder %s287, %s289
      %p293 = scmp.eq.s32.totalorder %s22, 0
      %p294 = por %p292, %p293
      %p295 = scmp.ne.s32.totalorder %s287, %s289
      %p296 = scmp.eq.s32.totalorder %s27, 1
      %p297 = por %p295, %p296
      %p298 = scmp.ne.s32.totalorder %s289, %s290
      %p299 = scmp.eq.s32.totalorder %s27, 0
      %p300 = por %p298, %p299
      %p301 = scmp.ne.s32.totalorder %s289, %s290
      %p302 = scmp.eq.s32.totalorder %s28, 1
      %p303 = por %p301, %p302
      %p305 = scmp.ne.s32.totalorder %s290, %s304
      %p306 = scmp.eq.s32.totalorder %s28, 0
      %p307 = por %p305, %p306
      %s308 = ssub.s32 %s22, %s29
      %p309 = scmp.eq.s32.totalorder %s308, 0
      %s311 = sadd.s32 %s310, 1
      %s312 = scalar_select %p309, %s310, %s311
      %p315 = pneg %p309
      %p316 = scmp.eq.s32.totalorder %s22, 1
      %p317 = por %p315, %p316
      %p318 = scmp.ne.s32.totalorder %s310, %s313
      %p319 = scmp.eq.s32.totalorder %s22, 0
      %p320 = por %p318, %p319
      %p321 = scmp.ne.s32.totalorder %s310, %s313
      %p322 = scmp.eq.s32.totalorder %s27, 1
      %p323 = por %p321, %p322
      %p324 = scmp.ne.s32.totalorder %s313, %s314
      %p325 = scmp.eq.s32.totalorder %s27, 0
      %p326 = por %p324, %p325
      %p327 = scmp.ne.s32.totalorder %s313, %s314
      %p328 = scmp.eq.s32.totalorder %s28, 1
      %p329 = por %p327, %p328
      %p331 = scmp.ne.s32.totalorder %s314, %s330
      %p332 = scmp.eq.s32.totalorder %s28, 0
      %p333 = por %p331, %p332
      %p334 = scmp.le.s32.totalorder 1, %s22
      %p335 = scmp.lt.s32.totalorder %s22, 3
      %p336 = pnand %p334, %p335
      %p337 = pneg %p336
      // Predicated region
      $region9: #{my_model_block.1} parent=5 // pred_check
        _
      $region10: #{my_model_block.1} parent=5 // pred_check_branch
        %339 = sbr.rel (%p336) target = $region12
      $region11: #{my_model_block.1} parent=5 // pred_region
        %s340 = ssub.s32 %s22, 1
        // Predicated region
        $region13: #{my_model_block.1} parent=11 // pred_check
          %p341 = pneg %p69
        $region14: #{my_model_block.1} parent=11 // pred_check_branch
          %343 = sbr.rel (%p341) target = $region16
        $region15: #{my_model_block.1} parent=11 // pred_region
          _
        $region16: #{my_model_block.1} parent=11 // pred_fallthru
          _
        // Predicated region
        $region17: #{my_model_block.1} parent=11 // pred_check
          %p344 = pneg %p90
        $region18: #{my_model_block.1} parent=11 // pred_check_branch
          %346 = sbr.rel (%p344) target = $region20
        $region19: #{my_model_block.1} parent=11 // pred_region
          _
        $region20: #{my_model_block.1} parent=11 // pred_fallthru
          _
        // Predicated region
        $region21: #{my_model_block.1} parent=11 // pred_check
          %p347 = pneg %p111
        $region22: #{my_model_block.1} parent=11 // pred_check_branch
          %349 = sbr.rel (%p347) target = $region24
        $region23: #{my_model_block.1} parent=11 // pred_region
          _
        $region24: #{my_model_block.1} parent=11 // pred_fallthru
          _
        // Predicated region
        $region25: #{my_model_block.1} parent=11 // pred_check
          %p350 = pneg %p132
        $region26: #{my_model_block.1} parent=11 // pred_check_branch
          %352 = sbr.rel (%p350) target = $region28
        $region27: #{my_model_block.1} parent=11 // pred_region
          _
        $region28: #{my_model_block.1} parent=11 // pred_fallthru
          _
        // Predicated region
        $region29: #{my_model_block.1} parent=11 // pred_check
          %p353 = pneg %p153
        $region30: #{my_model_block.1} parent=11 // pred_check_branch
          %355 = sbr.rel (%p353) target = $region32
        $region31: #{my_model_block.1} parent=11 // pred_region
          _
        $region32: #{my_model_block.1} parent=11 // pred_fallthru
          _
        // Predicated region
        $region33: #{my_model_block.1} parent=11 // pred_check
          %p356 = pneg %p174
        $region34: #{my_model_block.1} parent=11 // pred_check_branch
          %358 = sbr.rel (%p356) target = $region36
        $region35: #{my_model_block.1} parent=11 // pred_region
          _
        $region36: #{my_model_block.1} parent=11 // pred_fallthru
          _
        // Predicated region
        $region37: #{my_model_block.1} parent=11 // pred_check
          %p359 = pneg %p195
        $region38: #{my_model_block.1} parent=11 // pred_check_branch
          %361 = sbr.rel (%p359) target = $region40
        $region39: #{my_model_block.1} parent=11 // pred_region
          _
        $region40: #{my_model_block.1} parent=11 // pred_fallthru
          _
        // Predicated region
        $region41: #{my_model_block.1} parent=11 // pred_check
          %p362 = pneg %p216
        $region42: #{my_model_block.1} parent=11 // pred_check_branch
          %364 = sbr.rel (%p362) target = $region44
        $region43: #{my_model_block.1} parent=11 // pred_region
          _
        $region44: #{my_model_block.1} parent=11 // pred_fallthru
          _
        // Predicated region
        $region45: #{my_model_block.1} parent=11 // pred_check
          %p365 = pneg %p237
        $region46: #{my_model_block.1} parent=11 // pred_check_branch
          %367 = sbr.rel (%p365) target = $region48
        $region47: #{my_model_block.1} parent=11 // pred_region
          _
        $region48: #{my_model_block.1} parent=11 // pred_fallthru
          _
        // Predicated region
        $region49: #{my_model_block.1} parent=11 // pred_check
          %p368 = pneg %p258
        $region50: #{my_model_block.1} parent=11 // pred_check_branch
          %370 = sbr.rel (%p368) target = $region52
        $region51: #{my_model_block.1} parent=11 // pred_region
          _
        $region52: #{my_model_block.1} parent=11 // pred_fallthru
          _
        // Predicated region
        $region53: #{my_model_block.1} parent=11 // pred_check
          %p371 = pneg %p279
        $region54: #{my_model_block.1} parent=11 // pred_check_branch
          %373 = sbr.rel (%p371) target = $region56
        $region55: #{my_model_block.1} parent=11 // pred_region
          _
        $region56: #{my_model_block.1} parent=11 // pred_fallthru
          _
        // Predicated region
        $region57: #{my_model_block.1} parent=11 // pred_check
          %p374 = pneg %p300
        $region58: #{my_model_block.1} parent=11 // pred_check_branch
          %376 = sbr.rel (%p374) target = $region60
        $region59: #{my_model_block.1} parent=11 // pred_region
          _
        $region60: #{my_model_block.1} parent=11 // pred_fallthru
          _
      $region12: #{my_model_block.1} parent=5 // pred_fallthru
        _
      %p377 = scmp.lt.s32.totalorder %s22, 2
      // Predicated region
      $region61: #{my_model_block.1} parent=5 // pred_check
        %p378 = pneg %p377
      $region62: #{my_model_block.1} parent=5 // pred_check_branch
        %380 = sbr.rel (%p378) target = $region64
      $region63: #{my_model_block.1} parent=5 // pred_region
        // Predicated region
        $region65: #{my_model_block.1} parent=63 // pred_check
          %p381 = pneg %p42
        $region66: #{my_model_block.1} parent=63 // pred_check_branch
          %383 = sbr.rel (%p381) target = $region68
        $region67: #{my_model_block.1} parent=63 // pred_region
          %p384 = scmp.lt.s32.totalorder %s22, 1
          %s385 = scalar_select %p384, %s22, 1
          %s386 = smul.addr %s385, 8
          %s387 = smul.addr %s386, 8
          %s388 = scalar_lea.vmem %s0, %s387
        $region68: #{my_model_block.1} parent=63 // pred_fallthru
          _
      $region64: #{my_model_block.1} parent=5 // pred_fallthru
        _
      %p389 = scmp.le.s32.totalorder 1, %s22
      %p390 = scmp.lt.s32.totalorder %s22, 3
      %p391 = pnand %p389, %p390
      %p392 = pneg %p391
      // Predicated region
      $region69: #{my_model_block.1} parent=5 // pred_check
        _
      $region70: #{my_model_block.1} parent=5 // pred_check_branch
        %394 = sbr.rel (%p391) target = $region72
      $region71: #{my_model_block.1} parent=5 // pred_region
        %s395 = ssub.s32 %s22, 1
        %p396 = scmp.lt.s32.totalorder %s27, 1
        %s397 = scalar_select %p396, %s27, 1
        %s398 = smul.addr %s397, 8
        %s399 = smul.addr %s398, 8
        %s400 = scalar_lea.vmem %s0, %s399
        %p401 = pneg %p48
        %p402 = pneg %p45
        %p403 = pneg %p69
        %p404 = pneg %p66
        %p405 = pneg %p90
        %p406 = pneg %p87
        %p407 = pneg %p111
        %p408 = pneg %p108
        %p409 = pneg %p132
        %p410 = pneg %p129
        %p411 = pneg %p153
        %p412 = pneg %p150
        %p413 = pneg %p174
        %p414 = pneg %p171
        %p415 = pneg %p195
        %p416 = pneg %p192
        %p417 = pneg %p216
        %p418 = pneg %p213
        %p419 = pneg %p237
        %p420 = pneg %p234
        %p421 = pneg %p258
        %p422 = pneg %p255
        %p423 = pneg %p279
        %p424 = pneg %p276
        %p425 = pneg %p300
        %p426 = pneg %p297
        %p427 = pneg %p326
        %p428 = pneg %p323
        %s429 = sand.u32 %s313, 1
        %s430 = scalar_lea.sflag [#allocation3], %s429
        %s431 = sand.u32 %s313, 1
        %s432 = smul.addr %s431, 64
        %s433 = scalar_lea.vmem [#allocation2], %s432
        %p434 = scmp.lt.s32.totalorder %s27, 1
        %s435 = scalar_select %p434, %s27, 1
        %s436 = smul.addr %s435, 8
        %s437 = smul.addr %s436, 8
        %s438 = scalar_lea.vmem %s0, %s437
        %v439 = vld [vmem:[%s438] sm:$0xff]
        %v440 = vld [vmem:[%s438 + $0x8] sm:$0xff]
        %v441 = vld [vmem:[%s438 + $0x10] sm:$0xff]
        %v442 = vld [vmem:[%s438 + $0x18] sm:$0xff]
        %v443 = vld [vmem:[%s438 + $0x20] sm:$0xff]
        %v444 = vld [vmem:[%s438 + $0x28] sm:$0xff]
        %v445 = vld [vmem:[%s438 + $0x30] sm:$0xff]
        %v446 = vld [vmem:[%s438 + $0x38] sm:$0xff]
        %v447 = vld [vmem:[%s1] sm:$0xf]
        %vm448 = vcmask 31744
        %v450 = vsel %vm448, %v439, 0
        %v453 = vsel %vm448, %v440, 0
        %v456 = vsel %vm448, %v441, 0
        %v459 = vsel %vm448, %v442, 0
        %v462 = vsel %vm448, %v443, 0
        %v465 = vsel %vm448, %v444, 0
        %v468 = vsel %vm448, %v445, 0
        %v471 = vsel %vm448, %v446, 0
        %vm473 = vcmask 1043456
        %v475 = vsel %vm473, %v447, 0
        %477 = vmatpush.msra.mxu0 0.0
        %478 = vmatpush.msra.mxu0 0.0
        %479 = vmatpush.msra.mxu0 0.0
        %480 = vmatpush.msra.mxu0 0.0
        %481 = vmatpush.msra.mxu0 0.0
        %482 = vmatpush.msra.mxu0 0.0
        %483 = vmatpush.msra.mxu0 0.0
        %484 = vmatpush.msra.mxu0 0.0
        %485 = vmatpush.msra.mxu0 0.0
        %486 = vmatpush.msra.mxu0 0.0
        %487 = vmatpush.msra.mxu0 0.0
        %488 = vmatpush.msra.mxu0 0.0
        %489 = vmatpush.msra.mxu0 0.0
        %490 = vmatpush.msra.mxu0 0.0
        %491 = vmatpush.msra.mxu0 0.0
        %492 = vmatpush.msra.mxu0 %v475
        %493 = vmatmul.f32.gmra.mxu0 %v450
        %v494 = vpop.f32.mrf.mxu0
        %v495 = vadd.f32 0.0, %v494
        %496 = vmatmul.f32.gmra.mxu0 %v453
        %v497 = vpop.f32.mrf.mxu0
        %v498 = vadd.f32 0.0, %v497
        %499 = vmatmul.f32.gmra.mxu0 %v456
        %v500 = vpop.f32.mrf.mxu0
        %v501 = vadd.f32 0.0, %v500
        %502 = vmatmul.f32.gmra.mxu0 %v459
        %v503 = vpop.f32.mrf.mxu0
        %v504 = vadd.f32 0.0, %v503
        %505 = vmatmul.f32.gmra.mxu0 %v462
        %v506 = vpop.f32.mrf.mxu0
        %v507 = vadd.f32 0.0, %v506
        %508 = vmatmul.f32.gmra.mxu0 %v465
        %v509 = vpop.f32.mrf.mxu0
        %v510 = vadd.f32 0.0, %v509
        %511 = vmatmul.f32.gmra.mxu0 %v468
        %v512 = vpop.f32.mrf.mxu0
        %v513 = vadd.f32 0.0, %v512
        %514 = vmatmul.f32.gmra.mxu0 %v471
        %v515 = vpop.f32.mrf.mxu0
        %v516 = vadd.f32 0.0, %v515
        %517 = vdwg.mxu0
        %v518 = vld [vmem:[%s2] sm:$0x1]
        %v520 = vperm.slane %v518, 0
        %v522 = vmul.f32 %v495, %v520
        %v523 = vmul.f32 %v498, %v520
        %v524 = vmul.f32 %v501, %v520
        %v525 = vmul.f32 %v504, %v520
        %v526 = vmul.f32 %v507, %v520
        %v527 = vmul.f32 %v510, %v520
        %v528 = vmul.f32 %v513, %v520
        %v529 = vmul.f32 %v516, %v520
        %v530 = vld [vmem:[%s3] sm:$0x1]
        %v532 = vperm.slane %v530, 0
        %v534 = vadd.f32 %v522, %v532
        %v535 = vadd.f32 %v523, %v532
        %v536 = vadd.f32 %v524, %v532
        %v537 = vadd.f32 %v525, %v532
        %v538 = vadd.f32 %v526, %v532
        %v539 = vadd.f32 %v527, %v532
        %v540 = vadd.f32 %v528, %v532
        %v541 = vadd.f32 %v529, %v532
        %v542 = vmax.f32 %v534, 0.0
        %v543 = vmax.f32 %v535, 0.0
        %v544 = vmax.f32 %v536, 0.0
        %v545 = vmax.f32 %v537, 0.0
        %v546 = vmax.f32 %v538, 0.0
        %v547 = vmax.f32 %v539, 0.0
        %v548 = vmax.f32 %v540, 0.0
        %v549 = vmax.f32 %v541, 0.0
        %vm558 = vcmask 1040384
        %v559 = vrot.slane %v542, 7
        %v560 = vrot.slane %v543, 7
        %v561 = vsel %vm558, %v559, %v560
        %v562 = vrot.slane %v544, 7
        %v563 = vsel %vm558, %v560, %v562
        %v564 = vrot.slane %v545, 7
        %v565 = vsel %vm558, %v562, %v564
        %v566 = vrot.slane %v546, 7
        %v567 = vsel %vm558, %v564, %v566
        %v568 = vrot.slane %v547, 7
        %v569 = vsel %vm558, %v566, %v568
        %v570 = vrot.slane %v548, 7
        %v571 = vsel %vm558, %v568, %v570
        %v572 = vrot.slane %v549, 7
        %v573 = vsel %vm558, %v570, %v572
        %v583 = vsel %vm558, 0.0, %v559
        %v584 = vsel %vm558, %v572, 0.0
        %v585 = vlaneseq
        %v586 = vshrl.u32 %v585, 7
        %v587 = vadd.s32 %v586, 8
        %v588 = vadd.s32 %v586, 16
        %v589 = vadd.s32 %v586, 24
        %v590 = vadd.s32 %v586, 32
        %v591 = vadd.s32 %v586, 40
        %v592 = vadd.s32 %v586, 48
        %v593 = vadd.s32 %v586, 56
        %vm594 = vcmp.lt.s32.totalorder %v586, 0
        %v595 = vsub.s32 0, %v586
        %v596 = vsel %vm594, %v595, %v586
        %v597 = vshrl.u32 %v596, 3
        %v598 = vand.u32 %v596, 7
        %v599 = vsub.s32 0, %v598
        %v600 = vsel %vm594, %v599, %v598
        %vm601 = vcmp.lt.s32.totalorder %v587, 0
        %v602 = vsub.s32 0, %v587
        %v603 = vsel %vm601, %v602, %v587
        %v604 = vshrl.u32 %v603, 3
        %v605 = vand.u32 %v603, 7
        %v606 = vsub.s32 0, %v605
        %v607 = vsel %vm601, %v606, %v605
        %vm608 = vcmp.lt.s32.totalorder %v588, 0
        %v609 = vsub.s32 0, %v588
        %v610 = vsel %vm608, %v609, %v588
        %v611 = vshrl.u32 %v610, 3
        %v612 = vand.u32 %v610, 7
        %v613 = vsub.s32 0, %v612
        %v614 = vsel %vm608, %v613, %v612
        %vm615 = vcmp.lt.s32.totalorder %v589, 0
        %v616 = vsub.s32 0, %v589
        %v617 = vsel %vm615, %v616, %v589
        %v618 = vshrl.u32 %v617, 3
        %v619 = vand.u32 %v617, 7
        %v620 = vsub.s32 0, %v619
        %v621 = vsel %vm615, %v620, %v619
        %vm622 = vcmp.lt.s32.totalorder %v590, 0
        %v623 = vsub.s32 0, %v590
        %v624 = vsel %vm622, %v623, %v590
        %v625 = vshrl.u32 %v624, 3
        %v626 = vand.u32 %v624, 7
        %v627 = vsub.s32 0, %v626
        %v628 = vsel %vm622, %v627, %v626
        %vm629 = vcmp.lt.s32.totalorder %v591, 0
        %v630 = vsub.s32 0, %v591
        %v631 = vsel %vm629, %v630, %v591
        %v632 = vshrl.u32 %v631, 3
        %v633 = vand.u32 %v631, 7
        %v634 = vsub.s32 0, %v633
        %v635 = vsel %vm629, %v634, %v633
        %vm636 = vcmp.lt.s32.totalorder %v592, 0
        %v637 = vsub.s32 0, %v592
        %v638 = vsel %vm636, %v637, %v592
        %v639 = vshrl.u32 %v638, 3
        %v640 = vand.u32 %v638, 7
        %v641 = vsub.s32 0, %v640
        %v642 = vsel %vm636, %v641, %v640
        %vm643 = vcmp.lt.s32.totalorder %v593, 0
        %v644 = vsub.s32 0, %v593
        %v645 = vsel %vm643, %v644, %v593
        %v646 = vshrl.u32 %v645, 3
        %v647 = vand.u32 %v645, 7
        %v648 = vsub.s32 0, %v647
        %v649 = vsel %vm643, %v648, %v647
        %vm650 = vcmp.ne.s32.totalorder %v600, 0
        %vm651 = vcmp.ne.s32.totalorder %v607, 0
        %vm652 = vcmp.ne.s32.totalorder %v614, 0
        %vm653 = vcmp.ne.s32.totalorder %v621, 0
        %vm654 = vcmp.ne.s32.totalorder %v628, 0
        %vm655 = vcmp.ne.s32.totalorder %v635, 0
        %vm656 = vcmp.ne.s32.totalorder %v642, 0
        %vm657 = vcmp.ne.s32.totalorder %v649, 0
        %vm658 = vcmp.lt.s32.totalorder %v600, 0
        %vm659 = vcmp.lt.s32.totalorder %v607, 0
        %vm660 = vcmp.lt.s32.totalorder %v614, 0
        %vm661 = vcmp.lt.s32.totalorder %v621, 0
        %vm662 = vcmp.lt.s32.totalorder %v628, 0
        %vm663 = vcmp.lt.s32.totalorder %v635, 0
        %vm664 = vcmp.lt.s32.totalorder %v642, 0
        %vm665 = vcmp.lt.s32.totalorder %v649, 0
        %vm666 = vmand %vm658, %vm650
        %vm667 = vmand %vm659, %vm651
        %vm668 = vmand %vm660, %vm652
        %vm669 = vmand %vm661, %vm653
        %vm670 = vmand %vm662, %vm654
        %vm671 = vmand %vm663, %vm655
        %vm672 = vmand %vm664, %vm656
        %vm673 = vmand %vm665, %vm657
        %v674 = vadd.s32 %v600, 8
        %v675 = vadd.s32 %v607, 8
        %v676 = vadd.s32 %v614, 8
        %v677 = vadd.s32 %v621, 8
        %v678 = vadd.s32 %v628, 8
        %v679 = vadd.s32 %v635, 8
        %v680 = vadd.s32 %v642, 8
        %v681 = vadd.s32 %v649, 8
        %v682 = vsel %vm666, %v674, %v600
        %v683 = vsel %vm667, %v675, %v607
        %v684 = vsel %vm668, %v676, %v614
        %v685 = vsel %vm669, %v677, %v621
        %v686 = vsel %vm670, %v678, %v628
        %v687 = vsel %vm671, %v679, %v635
        %v688 = vsel %vm672, %v680, %v642
        %v689 = vsel %vm673, %v681, %v649
        %vm690 = vcmp.ge.s32.totalorder %v682, 1
        %vm691 = vcmp.ge.s32.totalorder %v683, 1
        %vm692 = vcmp.ge.s32.totalorder %v684, 1
        %vm693 = vcmp.ge.s32.totalorder %v685, 1
        %vm694 = vcmp.ge.s32.totalorder %v686, 1
        %vm695 = vcmp.ge.s32.totalorder %v687, 1
        %vm696 = vcmp.ge.s32.totalorder %v688, 1
        %vm697 = vcmp.ge.s32.totalorder %v689, 1
        %v698 = vsel %vm690, 1, 0
        %v699 = vsel %vm691, 1, 0
        %v700 = vsel %vm692, 1, 0
        %v701 = vsel %vm693, 1, 0
        %v702 = vsel %vm694, 1, 0
        %v703 = vsel %vm695, 1, 0
        %v704 = vsel %vm696, 1, 0
        %v705 = vsel %vm697, 1, 0
        %vm706 = vcmp.eq.s32.totalorder %v698, 1
        %vm707 = vcmp.eq.s32.totalorder %v699, 1
        %vm708 = vcmp.eq.s32.totalorder %v700, 1
        %vm709 = vcmp.eq.s32.totalorder %v701, 1
        %vm710 = vcmp.eq.s32.totalorder %v702, 1
        %vm711 = vcmp.eq.s32.totalorder %v703, 1
        %vm712 = vcmp.eq.s32.totalorder %v704, 1
        %vm713 = vcmp.eq.s32.totalorder %v705, 1
        %v714 = vsel %vm707, %v583, 0.0
        %v715 = vsel %vm708, %v561, 0.0
        %v716 = vsel %vm709, %v563, 0.0
        %v717 = vsel %vm710, %v565, 0.0
        %v718 = vsel %vm711, %v567, 0.0
        %v719 = vsel %vm712, %v569, 0.0
        %v720 = vsel %vm713, %v571, 0.0
        %vm721 = vcmp.le.s32.totalorder %v682, 6
        %vm722 = vcmp.le.s32.totalorder %v683, 6
        %vm723 = vcmp.le.s32.totalorder %v684, 6
        %vm724 = vcmp.le.s32.totalorder %v685, 6
        %vm725 = vcmp.le.s32.totalorder %v686, 6
        %vm726 = vcmp.le.s32.totalorder %v687, 6
        %vm727 = vcmp.le.s32.totalorder %v688, 6
        %vm728 = vcmp.le.s32.totalorder %v689, 6
        %v729 = vsel %vm721, 1, 0
        %v730 = vsel %vm722, 1, 0
        %v731 = vsel %vm723, 1, 0
        %v732 = vsel %vm724, 1, 0
        %v733 = vsel %vm725, 1, 0
        %v734 = vsel %vm726, 1, 0
        %v735 = vsel %vm727, 1, 0
        %v736 = vsel %vm728, 1, 0
        %vm737 = vcmp.eq.s32.totalorder %v729, 1
        %vm738 = vcmp.eq.s32.totalorder %v730, 1
        %vm739 = vcmp.eq.s32.totalorder %v731, 1
        %vm740 = vcmp.eq.s32.totalorder %v732, 1
        %vm741 = vcmp.eq.s32.totalorder %v733, 1
        %vm742 = vcmp.eq.s32.totalorder %v734, 1
        %vm743 = vcmp.eq.s32.totalorder %v735, 1
        %vm744 = vcmp.eq.s32.totalorder %v736, 1
        %vm747 = vcmask 1045504
        %v748 = vrot.slane 0.0, 2
        %v749 = vrot.slane %v583, 2
        %v750 = vsel %vm747, %v748, %v749
        %v751 = vrot.slane %v561, 2
        %v752 = vsel %vm747, %v749, %v751
        %v753 = vrot.slane %v563, 2
        %v754 = vsel %vm747, %v751, %v753
        %v755 = vrot.slane %v565, 2
        %v756 = vsel %vm747, %v753, %v755
        %v757 = vrot.slane %v567, 2
        %v758 = vsel %vm747, %v755, %v757
        %v759 = vrot.slane %v569, 2
        %v760 = vsel %vm747, %v757, %v759
        %v761 = vrot.slane %v571, 2
        %v762 = vsel %vm747, %v759, %v761
        %v763 = vrot.slane %v573, 2
        %v764 = vsel %vm747, %v761, %v763
        %v773 = vsel %vm737, %v750, 0.0
        %v774 = vsel %vm738, %v752, 0.0
        %v775 = vsel %vm739, %v754, 0.0
        %v776 = vsel %vm740, %v756, 0.0
        %v777 = vsel %vm741, %v758, 0.0
        %v778 = vsel %vm742, %v760, 0.0
        %v779 = vsel %vm743, %v762, 0.0
        %v780 = vsel %vm744, %v764, 0.0
        %v781 = vsel %vm706, %v583, 0.0
        %v782 = vsel %vm707, %v561, 0.0
        %v783 = vsel %vm708, %v563, 0.0
        %v784 = vsel %vm709, %v565, 0.0
        %v785 = vsel %vm710, %v567, 0.0
        %v786 = vsel %vm711, %v569, 0.0
        %v787 = vsel %vm712, %v571, 0.0
        %v788 = vsel %vm713, %v573, 0.0
        %v790 = vrot.slane %v584, 2
        %v791 = vsel %vm747, %v763, %v790
        %v793 = vsel %vm737, %v752, 0.0
        %v794 = vsel %vm738, %v754, 0.0
        %v795 = vsel %vm739, %v756, 0.0
        %v796 = vsel %vm740, %v758, 0.0
        %v797 = vsel %vm741, %v760, 0.0
        %v798 = vsel %vm742, %v762, 0.0
        %v799 = vsel %vm743, %v764, 0.0
        %v800 = vsel %vm744, %v791, 0.0
        %v801 = vsel %vm706, %v561, 0.0
        %v802 = vsel %vm707, %v563, 0.0
        %v803 = vsel %vm708, %v565, 0.0
        %v804 = vsel %vm709, %v567, 0.0
        %v805 = vsel %vm710, %v569, 0.0
        %v806 = vsel %vm711, %v571, 0.0
        %v807 = vsel %vm712, %v573, 0.0
        %v808 = vsel %vm713, %v584, 0.0
        %v809 = vsel %vm747, %v790, %v748
        %v811 = vsel %vm737, %v754, 0.0
        %v812 = vsel %vm738, %v756, 0.0
        %v813 = vsel %vm739, %v758, 0.0
        %v814 = vsel %vm740, %v760, 0.0
        %v815 = vsel %vm741, %v762, 0.0
        %v816 = vsel %vm742, %v764, 0.0
        %v817 = vsel %vm743, %v791, 0.0
        %v818 = vsel %vm744, %v809, 0.0
        %vm819 = vcmask 1046528
        %v820 = vrot.slane 0.0, 1
        %v821 = vrot.slane %v583, 1
        %v822 = vsel %vm819, %v820, %v821
        %v823 = vrot.slane %v561, 1
        %v824 = vsel %vm819, %v821, %v823
        %v825 = vrot.slane %v563, 1
        %v826 = vsel %vm819, %v823, %v825
        %v827 = vrot.slane %v565, 1
        %v828 = vsel %vm819, %v825, %v827
        %v829 = vrot.slane %v567, 1
        %v830 = vsel %vm819, %v827, %v829
        %v831 = vrot.slane %v569, 1
        %v832 = vsel %vm819, %v829, %v831
        %v833 = vrot.slane %v571, 1
        %v834 = vsel %vm819, %v831, %v833
        %v835 = vrot.slane %v573, 1
        %v836 = vsel %vm819, %v833, %v835
        %837 = vrot.lane.b32.xlu0 %v822, 8
        %v838 = vpop.permute.xlu0 %837
        %839 = vrot.lane.b32.xlu0 %v824, 8
        %v840 = vpop.permute.xlu0 %839
        %841 = vrot.lane.b32.xlu0 %v826, 8
        %v842 = vpop.permute.xlu0 %841
        %843 = vrot.lane.b32.xlu0 %v828, 8
        %v844 = vpop.permute.xlu0 %843
        %845 = vrot.lane.b32.xlu0 %v830, 8
        %v846 = vpop.permute.xlu0 %845
        %847 = vrot.lane.b32.xlu0 %v832, 8
        %v848 = vpop.permute.xlu0 %847
        %849 = vrot.lane.b32.xlu0 %v834, 8
        %v850 = vpop.permute.xlu0 %849
        %851 = vrot.lane.b32.xlu0 %v836, 8
        %v852 = vpop.permute.xlu0 %851
        %869 = vrot.lane.b32.xlu0 %v773, 16
        %v870 = vpop.permute.xlu0 %869
        %871 = vrot.lane.b32.xlu0 %v774, 16
        %v872 = vpop.permute.xlu0 %871
        %873 = vrot.lane.b32.xlu0 %v775, 16
        %v874 = vpop.permute.xlu0 %873
        %875 = vrot.lane.b32.xlu0 %v776, 16
        %v876 = vpop.permute.xlu0 %875
        %877 = vrot.lane.b32.xlu0 %v777, 16
        %v878 = vpop.permute.xlu0 %877
        %879 = vrot.lane.b32.xlu0 %v778, 16
        %v880 = vpop.permute.xlu0 %879
        %881 = vrot.lane.b32.xlu0 %v779, 16
        %v882 = vpop.permute.xlu0 %881
        %883 = vrot.lane.b32.xlu0 %v780, 16
        %v884 = vpop.permute.xlu0 %883
        %901 = vrot.lane.b32.xlu0 %v781, 24
        %v902 = vpop.permute.xlu0 %901
        %903 = vrot.lane.b32.xlu0 %v782, 24
        %v904 = vpop.permute.xlu0 %903
        %905 = vrot.lane.b32.xlu0 %v783, 24
        %v906 = vpop.permute.xlu0 %905
        %907 = vrot.lane.b32.xlu0 %v784, 24
        %v908 = vpop.permute.xlu0 %907
        %909 = vrot.lane.b32.xlu0 %v785, 24
        %v910 = vpop.permute.xlu0 %909
        %911 = vrot.lane.b32.xlu0 %v786, 24
        %v912 = vpop.permute.xlu0 %911
        %913 = vrot.lane.b32.xlu0 %v787, 24
        %v914 = vpop.permute.xlu0 %913
        %915 = vrot.lane.b32.xlu0 %v788, 24
        %v916 = vpop.permute.xlu0 %915
        %v925 = vrot.slane %v584, 1
        %v926 = vsel %vm819, %v835, %v925
        %927 = vrot.lane.b32.xlu0 %v824, 32
        %v928 = vpop.permute.xlu0 %927
        %929 = vrot.lane.b32.xlu0 %v826, 32
        %v930 = vpop.permute.xlu0 %929
        %931 = vrot.lane.b32.xlu0 %v828, 32
        %v932 = vpop.permute.xlu0 %931
        %933 = vrot.lane.b32.xlu0 %v830, 32
        %v934 = vpop.permute.xlu0 %933
        %935 = vrot.lane.b32.xlu0 %v832, 32
        %v936 = vpop.permute.xlu0 %935
        %937 = vrot.lane.b32.xlu0 %v834, 32
        %v938 = vpop.permute.xlu0 %937
        %939 = vrot.lane.b32.xlu0 %v836, 32
        %v940 = vpop.permute.xlu0 %939
        %941 = vrot.lane.b32.xlu0 %v926, 32
        %v942 = vpop.permute.xlu0 %941
        %959 = vrot.lane.b32.xlu0 %v793, 40
        %v960 = vpop.permute.xlu0 %959
        %961 = vrot.lane.b32.xlu0 %v794, 40
        %v962 = vpop.permute.xlu0 %961
        %963 = vrot.lane.b32.xlu0 %v795, 40
        %v964 = vpop.permute.xlu0 %963
        %965 = vrot.lane.b32.xlu0 %v796, 40
        %v966 = vpop.permute.xlu0 %965
        %967 = vrot.lane.b32.xlu0 %v797, 40
        %v968 = vpop.permute.xlu0 %967
        %969 = vrot.lane.b32.xlu0 %v798, 40
        %v970 = vpop.permute.xlu0 %969
        %971 = vrot.lane.b32.xlu0 %v799, 40
        %v972 = vpop.permute.xlu0 %971
        %973 = vrot.lane.b32.xlu0 %v800, 40
        %v974 = vpop.permute.xlu0 %973
        %991 = vrot.lane.b32.xlu0 %v801, 48
        %v992 = vpop.permute.xlu0 %991
        %993 = vrot.lane.b32.xlu0 %v802, 48
        %v994 = vpop.permute.xlu0 %993
        %995 = vrot.lane.b32.xlu0 %v803, 48
        %v996 = vpop.permute.xlu0 %995
        %997 = vrot.lane.b32.xlu0 %v804, 48
        %v998 = vpop.permute.xlu0 %997
        %999 = vrot.lane.b32.xlu0 %v805, 48
        %v1000 = vpop.permute.xlu0 %999
        %1001 = vrot.lane.b32.xlu0 %v806, 48
        %v1002 = vpop.permute.xlu0 %1001
        %1003 = vrot.lane.b32.xlu0 %v807, 48
        %v1004 = vpop.permute.xlu0 %1003
        %1005 = vrot.lane.b32.xlu0 %v808, 48
        %v1006 = vpop.permute.xlu0 %1005
        %v1015 = vsel %vm819, %v925, %v820
        %1016 = vrot.lane.b32.xlu0 %v826, 56
        %v1017 = vpop.permute.xlu0 %1016
        %1018 = vrot.lane.b32.xlu0 %v828, 56
        %v1019 = vpop.permute.xlu0 %1018
        %1020 = vrot.lane.b32.xlu0 %v830, 56
        %v1021 = vpop.permute.xlu0 %1020
        %1022 = vrot.lane.b32.xlu0 %v832, 56
        %v1023 = vpop.permute.xlu0 %1022
        %1024 = vrot.lane.b32.xlu0 %v834, 56
        %v1025 = vpop.permute.xlu0 %1024
        %1026 = vrot.lane.b32.xlu0 %v836, 56
        %v1027 = vpop.permute.xlu0 %1026
        %1028 = vrot.lane.b32.xlu0 %v926, 56
        %v1029 = vpop.permute.xlu0 %1028
        %1030 = vrot.lane.b32.xlu0 %v1015, 56
        %v1031 = vpop.permute.xlu0 %1030
        %1048 = vrot.lane.b32.xlu0 %v811, 64
        %v1049 = vpop.permute.xlu0 %1048
        %1050 = vrot.lane.b32.xlu0 %v812, 64
        %v1051 = vpop.permute.xlu0 %1050
        %1052 = vrot.lane.b32.xlu0 %v813, 64
        %v1053 = vpop.permute.xlu0 %1052
        %1054 = vrot.lane.b32.xlu0 %v814, 64
        %v1055 = vpop.permute.xlu0 %1054
        %1056 = vrot.lane.b32.xlu0 %v815, 64
        %v1057 = vpop.permute.xlu0 %1056
        %1058 = vrot.lane.b32.xlu0 %v816, 64
        %v1059 = vpop.permute.xlu0 %1058
        %1060 = vrot.lane.b32.xlu0 %v817, 64
        %v1061 = vpop.permute.xlu0 %1060
        %1062 = vrot.lane.b32.xlu0 %v818, 64
        %v1063 = vpop.permute.xlu0 %1062
        %vm1072 = vcmask 64512
        %v1073 = vsel %vm1072, 0.0, %v838
        %v1074 = vsel %vm1072, %v714, %v840
        %v1075 = vsel %vm1072, %v715, %v842
        %v1076 = vsel %vm1072, %v716, %v844
        %v1077 = vsel %vm1072, %v717, %v846
        %v1078 = vsel %vm1072, %v718, %v848
        %v1079 = vsel %vm1072, %v719, %v850
        %v1080 = vsel %vm1072, %v720, %v852
        %vm1081 = vcmask 130048
        %v1082 = vsel %vm1081, %v1073, %v870
        %v1083 = vsel %vm1081, %v1074, %v872
        %v1084 = vsel %vm1081, %v1075, %v874
        %v1085 = vsel %vm1081, %v1076, %v876
        %v1086 = vsel %vm1081, %v1077, %v878
        %v1087 = vsel %vm1081, %v1078, %v880
        %v1088 = vsel %vm1081, %v1079, %v882
        %v1089 = vsel %vm1081, %v1080, %v884
        %vm1090 = vcmask 195584
        %v1091 = vsel %vm1090, %v1082, %v902
        %v1092 = vsel %vm1090, %v1083, %v904
        %v1093 = vsel %vm1090, %v1084, %v906
        %v1094 = vsel %vm1090, %v1085, %v908
        %v1095 = vsel %vm1090, %v1086, %v910
        %v1096 = vsel %vm1090, %v1087, %v912
        %v1097 = vsel %vm1090, %v1088, %v914
        %v1098 = vsel %vm1090, %v1089, %v916
        %vm1099 = vcmask 261120
        %v1100 = vsel %vm1099, %v1091, %v928
        %v1101 = vsel %vm1099, %v1092, %v930
        %v1102 = vsel %vm1099, %v1093, %v932
        %v1103 = vsel %vm1099, %v1094, %v934
        %v1104 = vsel %vm1099, %v1095, %v936
        %v1105 = vsel %vm1099, %v1096, %v938
        %v1106 = vsel %vm1099, %v1097, %v940
        %v1107 = vsel %vm1099, %v1098, %v942
        %vm1108 = vcmask 326656
        %v1109 = vsel %vm1108, %v1100, %v960
        %v1110 = vsel %vm1108, %v1101, %v962
        %v1111 = vsel %vm1108, %v1102, %v964
        %v1112 = vsel %vm1108, %v1103, %v966
        %v1113 = vsel %vm1108, %v1104, %v968
        %v1114 = vsel %vm1108, %v1105, %v970
        %v1115 = vsel %vm1108, %v1106, %v972
        %v1116 = vsel %vm1108, %v1107, %v974
        %vm1117 = vcmask 392192
        %v1118 = vsel %vm1117, %v1109, %v992
        %v1119 = vsel %vm1117, %v1110, %v994
        %v1120 = vsel %vm1117, %v1111, %v996
        %v1121 = vsel %vm1117, %v1112, %v998
        %v1122 = vsel %vm1117, %v1113, %v1000
        %v1123 = vsel %vm1117, %v1114, %v1002
        %v1124 = vsel %vm1117, %v1115, %v1004
        %v1125 = vsel %vm1117, %v1116, %v1006
        %vm1126 = vcmask 457728
        %v1127 = vsel %vm1126, %v1118, %v1017
        %v1128 = vsel %vm1126, %v1119, %v1019
        %v1129 = vsel %vm1126, %v1120, %v1021
        %v1130 = vsel %vm1126, %v1121, %v1023
        %v1131 = vsel %vm1126, %v1122, %v1025
        %v1132 = vsel %vm1126, %v1123, %v1027
        %v1133 = vsel %vm1126, %v1124, %v1029
        %v1134 = vsel %vm1126, %v1125, %v1031
        %vm1135 = vcmask 523264
        %v1136 = vsel %vm1135, %v1127, %v1049
        %v1137 = vsel %vm1135, %v1128, %v1051
        %v1138 = vsel %vm1135, %v1129, %v1053
        %v1139 = vsel %vm1135, %v1130, %v1055
        %v1140 = vsel %vm1135, %v1131, %v1057
        %v1141 = vsel %vm1135, %v1132, %v1059
        %v1142 = vsel %vm1135, %v1133, %v1061
        %v1143 = vsel %vm1135, %v1134, %v1063
        %v1144 = vld [vmem:[%s4] sm:$0xff]
        %v1145 = vld [vmem:[%s4 + $0x8] sm:$0xff]
        %v1146 = vld [vmem:[%s4 + $0x10] sm:$0xff]
        %v1147 = vld [vmem:[%s4 + $0x18] sm:$0xff]
        %v1148 = vld [vmem:[%s4 + $0x20] sm:$0xff]
        %v1149 = vld [vmem:[%s4 + $0x28] sm:$0xff]
        %v1150 = vld [vmem:[%s4 + $0x30] sm:$0xff]
        %v1151 = vld [vmem:[%s4 + $0x38] sm:$0xff]
        %v1152 = vld [vmem:[%s4 + $0x40] sm:$0xff]
        %vm1153 = vcmask 588800
        %v1155 = vsel %vm1153, %v1136, 0
        %v1158 = vsel %vm1153, %v1137, 0
        %v1161 = vsel %vm1153, %v1138, 0
        %v1164 = vsel %vm1153, %v1139, 0
        %v1167 = vsel %vm1153, %v1140, 0
        %v1170 = vsel %vm1153, %v1141, 0
        %v1173 = vsel %vm1153, %v1142, 0
        %v1176 = vsel %vm1153, %v1143, 0
        %1178 = vmatpush.msra.mxu0 0.0
        %1179 = vmatpush.msra.mxu0 0.0
        %1180 = vmatpush.msra.mxu0 0.0
        %1181 = vmatpush.msra.mxu0 0.0
        %1182 = vmatpush.msra.mxu0 0.0
        %1183 = vmatpush.msra.mxu0 0.0
        %1184 = vmatpush.msra.mxu0 0.0
        %1185 = vmatpush.msra.mxu0 %v1152
        %1186 = vmatpush.msra.mxu0 %v1151
        %1187 = vmatpush.msra.mxu0 %v1150
        %1188 = vmatpush.msra.mxu0 %v1149
        %1189 = vmatpush.msra.mxu0 %v1148
        %1190 = vmatpush.msra.mxu0 %v1147
        %1191 = vmatpush.msra.mxu0 %v1146
        %1192 = vmatpush.msra.mxu0 %v1145
        %1193 = vmatpush.msra.mxu0 %v1144
        %1194 = vmatmul.f32.gmra.mxu0 %v1155
        %v1195 = vpop.f32.mrf.mxu0
        %v1196 = vadd.f32 0.0, %v1195
        %1197 = vmatmul.f32.gmra.mxu0 %v1158
        %v1198 = vpop.f32.mrf.mxu0
        %v1199 = vadd.f32 0.0, %v1198
        %1200 = vmatmul.f32.gmra.mxu0 %v1161
        %v1201 = vpop.f32.mrf.mxu0
        %v1202 = vadd.f32 0.0, %v1201
        %1203 = vmatmul.f32.gmra.mxu0 %v1164
        %v1204 = vpop.f32.mrf.mxu0
        %v1205 = vadd.f32 0.0, %v1204
        %1206 = vmatmul.f32.gmra.mxu0 %v1167
        %v1207 = vpop.f32.mrf.mxu0
        %v1208 = vadd.f32 0.0, %v1207
        %1209 = vmatmul.f32.gmra.mxu0 %v1170
        %v1210 = vpop.f32.mrf.mxu0
        %v1211 = vadd.f32 0.0, %v1210
        %1212 = vmatmul.f32.gmra.mxu0 %v1173
        %v1213 = vpop.f32.mrf.mxu0
        %v1214 = vadd.f32 0.0, %v1213
        %1215 = vmatmul.f32.gmra.mxu0 %v1176
        %v1216 = vpop.f32.mrf.mxu0
        %v1217 = vadd.f32 0.0, %v1216
        %1218 = vdwg.mxu0
        %v1219 = vld [vmem:[%s5] sm:$0x1]
        %v1221 = vperm.slane %v1219, 0
        %v1223 = vmul.f32 %v1196, %v1221
        %v1224 = vmul.f32 %v1199, %v1221
        %v1225 = vmul.f32 %v1202, %v1221
        %v1226 = vmul.f32 %v1205, %v1221
        %v1227 = vmul.f32 %v1208, %v1221
        %v1228 = vmul.f32 %v1211, %v1221
        %v1229 = vmul.f32 %v1214, %v1221
        %v1230 = vmul.f32 %v1217, %v1221
        %v1231 = vld [vmem:[%s6] sm:$0x1]
        %v1233 = vperm.slane %v1231, 0
        %v1235 = vadd.f32 %v1223, %v1233
        %v1236 = vadd.f32 %v1224, %v1233
        %v1237 = vadd.f32 %v1225, %v1233
        %v1238 = vadd.f32 %v1226, %v1233
        %v1239 = vadd.f32 %v1227, %v1233
        %v1240 = vadd.f32 %v1228, %v1233
        %v1241 = vadd.f32 %v1229, %v1233
        %v1242 = vadd.f32 %v1230, %v1233
        %v1243 = vmax.f32 %v1235, 0.0
        %v1244 = vmax.f32 %v1236, 0.0
        %v1245 = vmax.f32 %v1237, 0.0
        %v1246 = vmax.f32 %v1238, 0.0
        %v1247 = vmax.f32 %v1239, 0.0
        %v1248 = vmax.f32 %v1240, 0.0
        %v1249 = vmax.f32 %v1241, 0.0
        %v1250 = vmax.f32 %v1242, 0.0
        %v1251 = vld [vmem:[%s7] sm:$0xff]
        %v1253 = vsel %vm1072, %v1243, 0
        %v1256 = vsel %vm1072, %v1244, 0
        %v1259 = vsel %vm1072, %v1245, 0
        %v1262 = vsel %vm1072, %v1246, 0
        %v1265 = vsel %vm1072, %v1247, 0
        %v1268 = vsel %vm1072, %v1248, 0
        %v1271 = vsel %vm1072, %v1249, 0
        %v1274 = vsel %vm1072, %v1250, 0
        %1276 = vmatpush.msra.mxu0 0.0
        %1277 = vmatpush.msra.mxu0 0.0
        %1278 = vmatpush.msra.mxu0 0.0
        %1279 = vmatpush.msra.mxu0 0.0
        %1280 = vmatpush.msra.mxu0 0.0
        %1281 = vmatpush.msra.mxu0 0.0
        %1282 = vmatpush.msra.mxu0 0.0
        %1283 = vmatpush.msra.mxu0 0.0
        %1284 = vmatpush.msra.mxu0 0.0
        %1285 = vmatpush.msra.mxu0 0.0
        %1286 = vmatpush.msra.mxu0 0.0
        %1287 = vmatpush.msra.mxu0 0.0
        %1288 = vmatpush.msra.mxu0 0.0
        %1289 = vmatpush.msra.mxu0 0.0
        %1290 = vmatpush.msra.mxu0 0.0
        %1291 = vmatpush.msra.mxu0 %v1251
        %1292 = vmatmul.f32.gmra.mxu0 %v1253
        %v1293 = vpop.f32.mrf.mxu0
        %v1294 = vadd.f32 0.0, %v1293
        %1295 = vmatmul.f32.gmra.mxu0 %v1256
        %v1296 = vpop.f32.mrf.mxu0
        %v1297 = vadd.f32 0.0, %v1296
        %1298 = vmatmul.f32.gmra.mxu0 %v1259
        %v1299 = vpop.f32.mrf.mxu0
        %v1300 = vadd.f32 0.0, %v1299
        %1301 = vmatmul.f32.gmra.mxu0 %v1262
        %v1302 = vpop.f32.mrf.mxu0
        %v1303 = vadd.f32 0.0, %v1302
        %1304 = vmatmul.f32.gmra.mxu0 %v1265
        %v1305 = vpop.f32.mrf.mxu0
        %v1306 = vadd.f32 0.0, %v1305
        %1307 = vmatmul.f32.gmra.mxu0 %v1268
        %v1308 = vpop.f32.mrf.mxu0
        %v1309 = vadd.f32 0.0, %v1308
        %1310 = vmatmul.f32.gmra.mxu0 %v1271
        %v1311 = vpop.f32.mrf.mxu0
        %v1312 = vadd.f32 0.0, %v1311
        %1313 = vmatmul.f32.gmra.mxu0 %v1274
        %v1314 = vpop.f32.mrf.mxu0
        %v1315 = vadd.f32 0.0, %v1314
        %1316 = vdwg.mxu0
        %v1317 = vld [vmem:[%s8] sm:$0x1]
        %v1319 = vperm.slane %v1317, 0
        %v1321 = vmul.f32 %v1294, %v1319
        %v1322 = vmul.f32 %v1297, %v1319
        %v1323 = vmul.f32 %v1300, %v1319
        %v1324 = vmul.f32 %v1303, %v1319
        %v1325 = vmul.f32 %v1306, %v1319
        %v1326 = vmul.f32 %v1309, %v1319
        %v1327 = vmul.f32 %v1312, %v1319
        %v1328 = vmul.f32 %v1315, %v1319
        %v1329 = vld [vmem:[%s9] sm:$0x1]
        %v1331 = vperm.slane %v1329, 0
        %v1333 = vadd.f32 %v1321, %v1331
        %v1334 = vadd.f32 %v1322, %v1331
        %v1335 = vadd.f32 %v1323, %v1331
        %v1336 = vadd.f32 %v1324, %v1331
        %v1337 = vadd.f32 %v1325, %v1331
        %v1338 = vadd.f32 %v1326, %v1331
        %v1339 = vadd.f32 %v1327, %v1331
        %v1340 = vadd.f32 %v1328, %v1331
        %v1341 = vld [vmem:[%s10] sm:$0xf]
        %v1343 = vsel %vm473, %v1341, 0
        %1345 = vmatpush.msra.mxu0 0.0
        %1346 = vmatpush.msra.mxu0 0.0
        %1347 = vmatpush.msra.mxu0 0.0
        %1348 = vmatpush.msra.mxu0 0.0
        %1349 = vmatpush.msra.mxu0 0.0
        %1350 = vmatpush.msra.mxu0 0.0
        %1351 = vmatpush.msra.mxu0 0.0
        %1352 = vmatpush.msra.mxu0 0.0
        %1353 = vmatpush.msra.mxu0 0.0
        %1354 = vmatpush.msra.mxu0 0.0
        %1355 = vmatpush.msra.mxu0 0.0
        %1356 = vmatpush.msra.mxu0 0.0
        %1357 = vmatpush.msra.mxu0 0.0
        %1358 = vmatpush.msra.mxu0 0.0
        %1359 = vmatpush.msra.mxu0 0.0
        %1360 = vmatpush.msra.mxu0 %v1343
        %1361 = vmatmul.f32.gmra.mxu0 %v450
        %v1362 = vpop.f32.mrf.mxu0
        %v1363 = vadd.f32 0.0, %v1362
        %1364 = vmatmul.f32.gmra.mxu0 %v453
        %v1365 = vpop.f32.mrf.mxu0
        %v1366 = vadd.f32 0.0, %v1365
        %1367 = vmatmul.f32.gmra.mxu0 %v456
        %v1368 = vpop.f32.mrf.mxu0
        %v1369 = vadd.f32 0.0, %v1368
        %1370 = vmatmul.f32.gmra.mxu0 %v459
        %v1371 = vpop.f32.mrf.mxu0
        %v1372 = vadd.f32 0.0, %v1371
        %1373 = vmatmul.f32.gmra.mxu0 %v462
        %v1374 = vpop.f32.mrf.mxu0
        %v1375 = vadd.f32 0.0, %v1374
        %1376 = vmatmul.f32.gmra.mxu0 %v465
        %v1377 = vpop.f32.mrf.mxu0
        %v1378 = vadd.f32 0.0, %v1377
        %1379 = vmatmul.f32.gmra.mxu0 %v468
        %v1380 = vpop.f32.mrf.mxu0
        %v1381 = vadd.f32 0.0, %v1380
        %1382 = vmatmul.f32.gmra.mxu0 %v471
        %v1383 = vpop.f32.mrf.mxu0
        %v1384 = vadd.f32 0.0, %v1383
        %1385 = vdwg.mxu0
        %v1386 = vld [vmem:[%s11] sm:$0x1]
        %v1388 = vperm.slane %v1386, 0
        %v1390 = vmul.f32 %v1363, %v1388
        %v1391 = vmul.f32 %v1366, %v1388
        %v1392 = vmul.f32 %v1369, %v1388
        %v1393 = vmul.f32 %v1372, %v1388
        %v1394 = vmul.f32 %v1375, %v1388
        %v1395 = vmul.f32 %v1378, %v1388
        %v1396 = vmul.f32 %v1381, %v1388
        %v1397 = vmul.f32 %v1384, %v1388
        %v1398 = vld [vmem:[%s12] sm:$0x1]
        %v1400 = vperm.slane %v1398, 0
        %v1402 = vadd.f32 %v1390, %v1400
        %v1403 = vadd.f32 %v1391, %v1400
        %v1404 = vadd.f32 %v1392, %v1400
        %v1405 = vadd.f32 %v1393, %v1400
        %v1406 = vadd.f32 %v1394, %v1400
        %v1407 = vadd.f32 %v1395, %v1400
        %v1408 = vadd.f32 %v1396, %v1400
        %v1409 = vadd.f32 %v1397, %v1400
        %v1410 = vadd.f32 %v1333, %v1402
        %v1411 = vadd.f32 %v1334, %v1403
        %v1412 = vadd.f32 %v1335, %v1404
        %v1413 = vadd.f32 %v1336, %v1405
        %v1414 = vadd.f32 %v1337, %v1406
        %v1415 = vadd.f32 %v1338, %v1407
        %v1416 = vadd.f32 %v1339, %v1408
        %v1417 = vadd.f32 %v1340, %v1409
        %v1418 = vmax.f32 %v1410, 0.0
        %v1419 = vmax.f32 %v1411, 0.0
        %v1420 = vmax.f32 %v1412, 0.0
        %v1421 = vmax.f32 %v1413, 0.0
        %v1422 = vmax.f32 %v1414, 0.0
        %v1423 = vmax.f32 %v1415, 0.0
        %v1424 = vmax.f32 %v1416, 0.0
        %v1425 = vmax.f32 %v1417, 0.0
        %1426 = vst.msk [vmem:[%s433] sm:$0xff] %vm1081, %v1418
        %1427 = vst.msk [vmem:[%s433 + $0x8] sm:$0xff] %vm1081, %v1419
        %1428 = vst.msk [vmem:[%s433 + $0x10] sm:$0xff] %vm1081, %v1420
        %1429 = vst.msk [vmem:[%s433 + $0x18] sm:$0xff] %vm1081, %v1421
        %1430 = vst.msk [vmem:[%s433 + $0x20] sm:$0xff] %vm1081, %v1422
        %1431 = vst.msk [vmem:[%s433 + $0x28] sm:$0xff] %vm1081, %v1423
        %1432 = vst.msk [vmem:[%s433 + $0x30] sm:$0xff] %vm1081, %v1424
        %1433 = vst.msk [vmem:[%s433 + $0x38] sm:$0xff] %vm1081, %v1425
        %s1434 = sand.u32 %s313, 1
        %s1435 = scalar_lea.sflag [#allocation3], %s1434
        %s1436 = sand.u32 %s313, 1
        %s1437 = smul.addr %s1436, 64
        %s1438 = scalar_lea.vmem [#allocation2], %s1437
        // Predicated region
        $region73: #{my_model_block.1} parent=71 // pred_check
          %p1439 = pneg %p323
        $region74: #{my_model_block.1} parent=71 // pred_check_branch
          %1441 = sbr.rel (%p1439) target = $region76
        $region75: #{my_model_block.1} parent=71 // pred_region
          %1443 = vsyncadd %s1435, 0
          %s1444 = smul.addr %s27, 8
          %s1445 = smul.addr %s1444, 8
          %s1446 = scalar_lea.hbm %s13, %s1445
          %s1447 = sshll.u32 %s1438, 4
          %s1448 = int_to_ptr.vmem [resolvable:$true] %s1447
          %s1449 = sshll.u32 %s1446, 4
          %s1450 = int_to_ptr.hbm [resolvable:$true] %s1449
          %1455 = dma.vmem_to_hbm [thread:$0]  %s1448, 1024, %s1450, %s1435, 128, 128, 8
        $region76: #{my_model_block.1} parent=71 // pred_fallthru
          _
      $region72: #{my_model_block.1} parent=5 // pred_fallthru
        _
      %p1456 = scmp.le.s32.totalorder 2, %s22
      // Predicated region
      $region77: #{my_model_block.1} parent=5 // pred_check
        %p1457 = pneg %p1456
      $region78: #{my_model_block.1} parent=5 // pred_check_branch
        %1459 = sbr.rel (%p1457) target = $region80
      $region79: #{my_model_block.1} parent=5 // pred_region
        %s1460 = ssub.s32 %s22, 2
        // Predicated region
        $region81: #{my_model_block.1} parent=79 // pred_check
          %p1461 = pneg %p329
        $region82: #{my_model_block.1} parent=79 // pred_check_branch
          %1463 = sbr.rel (%p1461) target = $region84
        $region83: #{my_model_block.1} parent=79 // pred_region
          %s1464 = sand.u32 %s314, 1
          %s1465 = scalar_lea.sflag [#allocation3], %s1464
          %s1466 = sand.u32 %s314, 1
          %s1467 = smul.addr %s1466, 64
          %s1468 = scalar_lea.vmem [#allocation2], %s1467
          %1470 = dma.done %s1465, 1024
        $region84: #{my_model_block.1} parent=79 // pred_fallthru
          _
      $region80: #{my_model_block.1} parent=5 // pred_fallthru
        _
    $region6: #{my_model_block.1} parent=1 // loop_footer
      %s26 = sadd.s32 1, %s22
    $region7: #{my_model_block.1} parent=1 // loop_footer_branch
      %21 = sbr.rel target = $region3
    $region8: #{my_model_block.1} parent=1 // loop_exit
      _
    %1471 = vsyncpa [#allocation3], 1
    %s1472 = scalar_lea.sflag [#allocation3], 1
    %1473 = vsyncpa %s1472, 1

</llo_original>
